<compile_context>
chip_gen: v6e
topology: v6e:2x2x1
jax: 0.10.0
libtpu: 0.0.40
codegen_flags: <defaults>
</compile_context>

<pallas_src>
import functools

import jax
import jax.numpy as jnp
from jax import lax
from jax.experimental import pallas as pl
from jax.experimental.pallas import tpu as pltpu


def _round_up(x, m):
    return (x + m - 1) // m * m


# ---------------------------------------------------------------------------
# Fused Pallas kernel (one grid step per batch element)
# ---------------------------------------------------------------------------
#
# Flattened "frame" coordinates: the zero-padded image (H+6, W+2) is flattened
# row-major to a 1-D spatial axis (then zero-extended to a multiple of 128).
# Each 3x3 conv reads nine windows  z[:, off : off + L]  with off = kh*Wp + kw,
# shifting the coordinate frame by (Wp + 1) per conv.  Positions outside the
# valid interior are zeroed with a precomputed mask so they act as the next
# conv's zero padding.

def _basic_block_kernel(mask1_ref, x_ref, w1_ref, w2_ref, b_ref,
                        o_ref, p_ref, y1_ref, *, Wp, C16, P16, L2p):
    # x_ref  : (1, C16, L0p) f32   zero-padded input image, frame0
    # w1_ref : (P16, 9*C16) bf16   conv1 weights, BN1 scale folded in
    # w2_ref : (P16, 9*P16) bf16   conv2 weights, BN2 scale folded in
    # b_ref  : (P16, 2)     f32    [:, 0] = bn1 bias, [:, 1] = bn2 bias
    # mask1  : (1, L1p)     f32    1.0 on valid interior positions of frame1
    # o_ref  : (1, P16, L2p) f32   output in frame2 coordinates
    # p_ref  : VMEM (9*C16, L1p) bf16  shared im2col patch buffer (conv1 & conv2)
    # y1_ref : VMEM (P16, L1p)   bf16  conv1+bn1+relu result (zero outside interior)
    L1p = p_ref.shape[1]

    # ---- conv1: 9 shifted windows -> one bf16 MXU matmul with K = 9*C16 -----
    for kh in range(3):
        for kw in range(3):
            t = kh * 3 + kw
            off = kh * Wp + kw
            p_ref[t * C16:(t + 1) * C16, :] = \
                x_ref[0, :, off:off + L1p].astype(jnp.bfloat16)

    acc1 = jnp.dot(w1_ref[...], p_ref[...],
                   preferred_element_type=jnp.float32)            # (P16, L1p)
    y1 = jnp.maximum(acc1 + b_ref[:, 0:1], 0.0)
    # Zero everything outside the interior: serves as conv2's zero padding
    # (also kills the bias leaked into the lane-padding tail).
    y1_ref[...] = (y1 * mask1_ref[...]).astype(jnp.bfloat16)

    # ---- conv2 + bn2 + residual + relu (patches reuse p_ref: rows match,
    #      L2p <= L1p; p_ref's conv1 contents are dead after acc1) -----------
    for kh in range(3):
        for kw in range(3):
            t = kh * 3 + kw
            off = kh * Wp + kw
            p_ref[t * P16:(t + 1) * P16, :L2p] = y1_ref[:, off:off + L2p]

    acc2 = jnp.dot(w2_ref[...], p_ref[:, :L2p],
                   preferred_element_type=jnp.float32)            # (P16, L2p)
    residual = x_ref[0, :, 2 * Wp + 2: 2 * Wp + 2 + L2p]           # frame2 view
    o_ref[0] = jnp.maximum(acc2 + b_ref[:, 1:2] + residual, 0.0)


# ---------------------------------------------------------------------------
# Wrapper: BN folding into weights, channel/lane padding, flattened layout
# ---------------------------------------------------------------------------

def basic_block_forward(x_nchw, params, eps=1e-5):
    x = x_nchw.astype(jnp.float32)
    N, C, H, W = x.shape
    P = params['conv1_w'].shape[0]
    assert params['conv1_w'].shape[1] == C and P == C, \
        "identity-residual BasicBlock requires inplanes == planes, stride=1"

    # bf16 packs 16 sublanes per vreg -> pad channel dims to 16.
    C16 = _round_up(C, 16)
    P16 = _round_up(P, 16)
    Wp = W + 2
    L0 = (H + 6) * Wp            # 3 zero rows top & bottom, 1 zero col l/r
    L1 = L0 - 2 * Wp - 2         # frame1 length (after conv1)
    L2 = L1 - 2 * Wp - 2         # frame2 length (after conv2)

    # Lane-dense lengths: multiples of 128, while keeping enough tail zeros so
    # every tap window  [off, off + L_next)  with off <= 2*Wp+2 stays in range.
    L2p = _round_up(L2, 128)
    L1p = _round_up(max(L1, L2p + 2 * Wp + 2), 128)
    L0p = _round_up(max(L0, L1p + 2 * Wp + 2), 128)

    # frame0: zero-padded, channel-padded, flattened, lane-extended input.
    xp = jnp.pad(x, ((0, 0), (0, C16 - C), (3, 3), (1, 1))).reshape(N, C16, L0)
    xp = jnp.pad(xp, ((0, 0), (0, 0), (0, L0p - L0)))

    # Fold BN running stats: scale goes into the conv weights, bias stays.
    def fold_bn(g, b, m, v):
        g, b, m, v = (t.astype(jnp.float32) for t in (g, b, m, v))
        s = g / jnp.sqrt(v + eps)
        return s, b - m * s

    s1, b1 = fold_bn(params['bn1_gamma'], params['bn1_beta'],
                     params['bn1_mean'], params['bn1_var'])
    s2, b2 = fold_bn(params['bn2_gamma'], params['bn2_beta'],
                     params['bn2_mean'], params['bn2_var'])

    def prep_w(w, scale, cin_pad):
        cout, cin = w.shape[:2]
        wf = w.astype(jnp.float32) * scale[:, None, None, None]
        wpad = jnp.pad(wf, ((0, P16 - cout), (0, cin_pad - cin), (0, 0), (0, 0)))
        # (P16, cin_pad, 3, 3) -> (P16, 3, 3, cin_pad) -> (P16, 9*cin_pad)
        return jnp.transpose(wpad, (0, 2, 3, 1)).reshape(
            P16, 9 * cin_pad).astype(jnp.bfloat16)

    w1 = prep_w(params['conv1_w'], s1, C16)
    w2 = prep_w(params['conv2_w'], s2, P16)

    bias = jnp.stack([jnp.pad(b1, (0, P16 - P)),
                      jnp.pad(b2, (0, P16 - P))], axis=1)          # (P16, 2)

    # Interior mask in frame1 coordinates: pixel (i, j) sits at (i+2)*Wp + j.
    pos = jnp.arange(L1p, dtype=jnp.int32)
    row, col = pos // Wp, pos % Wp
    mask1 = ((row >= 2) & (row < 2 + H) & (col < W)).astype(jnp.float32)
    mask1 = mask1.reshape(1, L1p)

    kernel = functools.partial(_basic_block_kernel,
                               Wp=Wp, C16=C16, P16=P16, L2p=L2p)

    out_flat = pl.pallas_call(
        kernel,
        out_shape=jax.ShapeDtypeStruct((N, P16, L2p), jnp.float32),
        grid=(N,),
        in_specs=[
            pl.BlockSpec((1, L1p), lambda i: (0, 0)),            # mask1 (resident)
            pl.BlockSpec((1, C16, L0p), lambda i: (i, 0, 0)),    # x, frame0
            pl.BlockSpec((P16, 9 * C16), lambda i: (0, 0)),      # w1 (resident)
            pl.BlockSpec((P16, 9 * P16), lambda i: (0, 0)),      # w2 (resident)
            pl.BlockSpec((P16, 2), lambda i: (0, 0)),            # folded biases
        ],
        out_specs=pl.BlockSpec((1, P16, L2p), lambda i: (i, 0, 0)),
        scratch_shapes=[
            pltpu.VMEM((9 * C16, L1p), jnp.bfloat16),            # shared patches
            pltpu.VMEM((P16, L1p), jnp.bfloat16),                # conv1 output
        ],
        compiler_params=pltpu.CompilerParams(
            dimension_semantics=("parallel",)),
    )(mask1, xp, w1, w2, bias)

    # frame2 -> NCHW: pixel (i, j) sits at flat index (i+1)*Wp + j - 1.
    out = lax.slice(out_flat, (0, 0, Wp - 1), (N, P, Wp - 1 + H * Wp))
    return out.reshape(N, P, H, Wp)[:, :, :, :W]


# ---------------------------------------------------------------------------
# Pure-JAX reference (correctness check)
# ---------------------------------------------------------------------------

def _ref_forward(x, params, eps=1e-5):
    def conv(y, w):
        return lax.conv_general_dilated(
            y, w, window_strides=(1, 1), padding=((1, 1), (1, 1)),
            dimension_numbers=('NCHW', 'OIHW', 'NCHW'))

    def bn(y, g, b, m, v):
        g, b, m, v = (t[None, :, None, None] for t in (g, b, m, v))
        return (y - m) / jnp.sqrt(v + eps) * g + b

    out = jax.nn.relu(bn(conv(x, params['conv1_w']),
                         params['bn1_gamma'], params['bn1_beta'],
                         params['bn1_mean'], params['bn1_var']))
    out = bn(conv(out, params['conv2_w']),
             params['bn2_gamma'], params['bn2_beta'],
             params['bn2_mean'], params['bn2_var'])
    return jax.nn.relu(out + x)


# ---------------------------------------------------------------------------
# Main
# ---------------------------------------------------------------------------

if __name__ == "__main__":
    N, C, H, W = 2, 4, 16, 16        # inplanes = planes = 4, stride = 1
    keys = jax.random.split(jax.random.PRNGKey(0), 12)

    x = jax.random.normal(keys[0], (N, C, H, W), jnp.float32)
    params = {
        'conv1_w':   0.2 * jax.random.normal(keys[1], (C, C, 3, 3), jnp.float32),
        'conv2_w':   0.2 * jax.random.normal(keys[2], (C, C, 3, 3), jnp.float32),
        'bn1_gamma': 1.0 + 0.1 * jax.random.normal(keys[3], (C,), jnp.float32),
        'bn1_beta':  0.1 * jax.random.normal(keys[4], (C,), jnp.float32),
        'bn1_mean':  0.1 * jax.random.normal(keys[5], (C,), jnp.float32),
        'bn1_var':   jnp.abs(1.0 + 0.1 * jax.random.normal(keys[6], (C,), jnp.float32)),
        'bn2_gamma': 1.0 + 0.1 * jax.random.normal(keys[7], (C,), jnp.float32),
        'bn2_beta':  0.1 * jax.random.normal(keys[8], (C,), jnp.float32),
        'bn2_mean':  0.1 * jax.random.normal(keys[9], (C,), jnp.float32),
        'bn2_var':   jnp.abs(1.0 + 0.1 * jax.random.normal(keys[10], (C,), jnp.float32)),
    }

    out = basic_block_forward(x, params)
    out = jax.block_until_ready(out)

    ref = _ref_forward(x, params)
    assert out.shape == (N, C, H, W), out.shape
    # bf16 matmul operands (two chained convs) -> loosened tolerance.
    assert jnp.allclose(out, ref, atol=5e-2, rtol=5e-2), \
        float(jnp.max(jnp.abs(out - ref)))

    print("KERNEL_OK")
</pallas_src>

<mosaic_0001>
module attributes {stable_mosaic.version = 11 : i64} {
  func.func @_basic_block_kernel(%arg0: i32, %arg1: memref<1x512xf32, #tpu.memory_space<vmem>>, %arg2: memref<1x16x640xf32, #tpu.memory_space<vmem>>, %arg3: memref<16x144xbf16, #tpu.memory_space<vmem>>, %arg4: memref<16x144xbf16, #tpu.memory_space<vmem>>, %arg5: memref<16x2xf32, #tpu.memory_space<vmem>>, %arg6: memref<1x16x384xf32, #tpu.memory_space<vmem>>, %arg7: memref<144x512xbf16, #tpu.memory_space<vmem>>, %arg8: memref<16x512xbf16, #tpu.memory_space<vmem>>) attributes {dimension_semantics = [#tpu.dimension_semantics<parallel>], iteration_bounds = array<i64: 2>, scalar_prefetch = 0 : i64, scratch_operands = 2 : i64, tpu.core_type = #tpu.core_type<tc>, window_params = [{pipeline_mode = #tpu.pipeline_mode<synchronous>, transform_indices = @transform_0, window_bounds = array<i64: 1, 512>}, {transform_indices = @transform_1, window_bounds = array<i64: 1, 16, 640>}, {pipeline_mode = #tpu.pipeline_mode<synchronous>, transform_indices = @transform_2, window_bounds = array<i64: 16, 144>}, {pipeline_mode = #tpu.pipeline_mode<synchronous>, transform_indices = @transform_3, window_bounds = array<i64: 16, 144>}, {pipeline_mode = #tpu.pipeline_mode<synchronous>, transform_indices = @transform_4, window_bounds = array<i64: 16, 2>}, {transform_indices = @transform_5, window_bounds = array<i64: 1, 16, 384>}]} {
    %c0 = arith.constant 0 : index
    %c0_0 = arith.constant 0 : index
    %c0_1 = arith.constant 0 : index
    %0 = vector.load %arg2[%c0, %c0_0, %c0_1] : memref<1x16x640xf32, #tpu.memory_space<vmem>>, vector<1x16x512xf32>
    %1 = vector.shape_cast %0 : vector<1x16x512xf32> to vector<16x512xf32>
    %2 = arith.truncf %1 : vector<16x512xf32> to vector<16x512xbf16>
    %c0_2 = arith.constant 0 : index
    %c0_3 = arith.constant 0 : index
    %3 = vector.load %arg7[%c0_2, %c0_3] : memref<144x512xbf16, #tpu.memory_space<vmem>>, vector<16x512xbf16>
    tpu.vector_store %arg7[%c0_2, %c0_3], %2 {strides = array<i32>} : memref<144x512xbf16, #tpu.memory_space<vmem>>, vector<16x512xbf16>,
    %c0_4 = arith.constant 0 : index
    %c0_5 = arith.constant 0 : index
    %c1 = arith.constant 1 : index
    %4 = vector.load %arg2[%c0_4, %c0_5, %c1] : memref<1x16x640xf32, #tpu.memory_space<vmem>>, vector<1x16x512xf32>
    %5 = vector.shape_cast %4 : vector<1x16x512xf32> to vector<16x512xf32>
    %6 = arith.truncf %5 : vector<16x512xf32> to vector<16x512xbf16>
    %c16 = arith.constant 16 : index
    %c0_6 = arith.constant 0 : index
    %7 = vector.load %arg7[%c16, %c0_6] : memref<144x512xbf16, #tpu.memory_space<vmem>>, vector<16x512xbf16>
    tpu.vector_store %arg7[%c16, %c0_6], %6 {strides = array<i32>} : memref<144x512xbf16, #tpu.memory_space<vmem>>, vector<16x512xbf16>,
    %c0_7 = arith.constant 0 : index
    %c0_8 = arith.constant 0 : index
    %c2 = arith.constant 2 : index
    %8 = vector.load %arg2[%c0_7, %c0_8, %c2] : memref<1x16x640xf32, #tpu.memory_space<vmem>>, vector<1x16x512xf32>
    %9 = vector.shape_cast %8 : vector<1x16x512xf32> to vector<16x512xf32>
    %10 = arith.truncf %9 : vector<16x512xf32> to vector<16x512xbf16>
    %c32 = arith.constant 32 : index
    %c0_9 = arith.constant 0 : index
    %11 = vector.load %arg7[%c32, %c0_9] : memref<144x512xbf16, #tpu.memory_space<vmem>>, vector<16x512xbf16>
    tpu.vector_store %arg7[%c32, %c0_9], %10 {strides = array<i32>} : memref<144x512xbf16, #tpu.memory_space<vmem>>, vector<16x512xbf16>,
    %c0_10 = arith.constant 0 : index
    %c0_11 = arith.constant 0 : index
    %c18 = arith.constant 18 : index
    %12 = vector.load %arg2[%c0_10, %c0_11, %c18] : memref<1x16x640xf32, #tpu.memory_space<vmem>>, vector<1x16x512xf32>
    %13 = vector.shape_cast %12 : vector<1x16x512xf32> to vector<16x512xf32>
    %14 = arith.truncf %13 : vector<16x512xf32> to vector<16x512xbf16>
    %c48 = arith.constant 48 : index
    %c0_12 = arith.constant 0 : index
    %15 = vector.load %arg7[%c48, %c0_12] : memref<144x512xbf16, #tpu.memory_space<vmem>>, vector<16x512xbf16>
    tpu.vector_store %arg7[%c48, %c0_12], %14 {strides = array<i32>} : memref<144x512xbf16, #tpu.memory_space<vmem>>, vector<16x512xbf16>,
    %c0_13 = arith.constant 0 : index
    %c0_14 = arith.constant 0 : index
    %c19 = arith.constant 19 : index
    %16 = vector.load %arg2[%c0_13, %c0_14, %c19] : memref<1x16x640xf32, #tpu.memory_space<vmem>>, vector<1x16x512xf32>
    %17 = vector.shape_cast %16 : vector<1x16x512xf32> to vector<16x512xf32>
    %18 = arith.truncf %17 : vector<16x512xf32> to vector<16x512xbf16>
    %c64 = arith.constant 64 : index
    %c0_15 = arith.constant 0 : index
    %19 = vector.load %arg7[%c64, %c0_15] : memref<144x512xbf16, #tpu.memory_space<vmem>>, vector<16x512xbf16>
    tpu.vector_store %arg7[%c64, %c0_15], %18 {strides = array<i32>} : memref<144x512xbf16, #tpu.memory_space<vmem>>, vector<16x512xbf16>,
    %c0_16 = arith.constant 0 : index
    %c0_17 = arith.constant 0 : index
    %c20 = arith.constant 20 : index
    %20 = vector.load %arg2[%c0_16, %c0_17, %c20] : memref<1x16x640xf32, #tpu.memory_space<vmem>>, vector<1x16x512xf32>
    %21 = vector.shape_cast %20 : vector<1x16x512xf32> to vector<16x512xf32>
    %22 = arith.truncf %21 : vector<16x512xf32> to vector<16x512xbf16>
    %c80 = arith.constant 80 : index
    %c0_18 = arith.constant 0 : index
    %23 = vector.load %arg7[%c80, %c0_18] : memref<144x512xbf16, #tpu.memory_space<vmem>>, vector<16x512xbf16>
    tpu.vector_store %arg7[%c80, %c0_18], %22 {strides = array<i32>} : memref<144x512xbf16, #tpu.memory_space<vmem>>, vector<16x512xbf16>,
    %c0_19 = arith.constant 0 : index
    %c0_20 = arith.constant 0 : index
    %c36 = arith.constant 36 : index
    %24 = vector.load %arg2[%c0_19, %c0_20, %c36] : memref<1x16x640xf32, #tpu.memory_space<vmem>>, vector<1x16x512xf32>
    %25 = vector.shape_cast %24 : vector<1x16x512xf32> to vector<16x512xf32>
    %26 = arith.truncf %25 : vector<16x512xf32> to vector<16x512xbf16>
    %c96 = arith.constant 96 : index
    %c0_21 = arith.constant 0 : index
    %27 = vector.load %arg7[%c96, %c0_21] : memref<144x512xbf16, #tpu.memory_space<vmem>>, vector<16x512xbf16>
    tpu.vector_store %arg7[%c96, %c0_21], %26 {strides = array<i32>} : memref<144x512xbf16, #tpu.memory_space<vmem>>, vector<16x512xbf16>,
    %c0_22 = arith.constant 0 : index
    %c0_23 = arith.constant 0 : index
    %c37 = arith.constant 37 : index
    %28 = vector.load %arg2[%c0_22, %c0_23, %c37] : memref<1x16x640xf32, #tpu.memory_space<vmem>>, vector<1x16x512xf32>
    %29 = vector.shape_cast %28 : vector<1x16x512xf32> to vector<16x512xf32>
    %30 = arith.truncf %29 : vector<16x512xf32> to vector<16x512xbf16>
    %c112 = arith.constant 112 : index
    %c0_24 = arith.constant 0 : index
    %31 = vector.load %arg7[%c112, %c0_24] : memref<144x512xbf16, #tpu.memory_space<vmem>>, vector<16x512xbf16>
    tpu.vector_store %arg7[%c112, %c0_24], %30 {strides = array<i32>} : memref<144x512xbf16, #tpu.memory_space<vmem>>, vector<16x512xbf16>,
    %c0_25 = arith.constant 0 : index
    %c0_26 = arith.constant 0 : index
    %c38 = arith.constant 38 : index
    %32 = vector.load %arg2[%c0_25, %c0_26, %c38] : memref<1x16x640xf32, #tpu.memory_space<vmem>>, vector<1x16x512xf32>
    %33 = vector.shape_cast %32 : vector<1x16x512xf32> to vector<16x512xf32>
    %34 = arith.truncf %33 : vector<16x512xf32> to vector<16x512xbf16>
    %c128 = arith.constant 128 : index
    %c0_27 = arith.constant 0 : index
    %35 = vector.load %arg7[%c128, %c0_27] : memref<144x512xbf16, #tpu.memory_space<vmem>>, vector<16x512xbf16>
    tpu.vector_store %arg7[%c128, %c0_27], %34 {strides = array<i32>} : memref<144x512xbf16, #tpu.memory_space<vmem>>, vector<16x512xbf16>,
    %c0_28 = arith.constant 0 : index
    %c0_29 = arith.constant 0 : index
    %36 = vector.load %arg3[%c0_28, %c0_29] : memref<16x144xbf16, #tpu.memory_space<vmem>>, vector<16x144xbf16>
    %c0_30 = arith.constant 0 : index
    %c0_31 = arith.constant 0 : index
    %37 = vector.load %arg7[%c0_30, %c0_31] : memref<144x512xbf16, #tpu.memory_space<vmem>>, vector<144x512xbf16>
    %cst = arith.constant dense<0.000000e+00> : vector<16x512xf32>
    %38 = tpu.matmul %36, %37, %cst {dimension_numbers = #tpu.dot_dimension_numbers<[1], [0], [0], [1], [0, 0, 1, 1], [], []>} : vector<16x144xbf16>, vector<144x512xbf16>, vector<16x512xf32> -> vector<16x512xf32>
    %c0_32 = arith.constant 0 : index
    %c0_33 = arith.constant 0 : index
    %39 = vector.load %arg5[%c0_32, %c0_33] : memref<16x2xf32, #tpu.memory_space<vmem>>, vector<16x1xf32>
    %40 = vector.broadcast %39 : vector<16x1xf32> to vector<16x512xf32>
    %41 = arith.addf %38, %40 : vector<16x512xf32>
    %cst_34 = arith.constant 0.000000e+00 : f32
    %42 = vector.broadcast %cst_34 : f32 to vector<16x512xf32>
    %43 = arith.maximumf %41, %42 : vector<16x512xf32>
    %c0_35 = arith.constant 0 : index
    %c0_36 = arith.constant 0 : index
    %44 = vector.load %arg1[%c0_35, %c0_36] : memref<1x512xf32, #tpu.memory_space<vmem>>, vector<1x512xf32>
    %45 = vector.broadcast %44 : vector<1x512xf32> to vector<16x512xf32>
    %46 = arith.mulf %43, %45 : vector<16x512xf32>
    %47 = arith.truncf %46 : vector<16x512xf32> to vector<16x512xbf16>
    %c0_37 = arith.constant 0 : index
    %c0_38 = arith.constant 0 : index
    %48 = vector.load %arg8[%c0_37, %c0_38] : memref<16x512xbf16, #tpu.memory_space<vmem>>, vector<16x512xbf16>
    tpu.vector_store %arg8[%c0_37, %c0_38], %47 {strides = array<i32>} : memref<16x512xbf16, #tpu.memory_space<vmem>>, vector<16x512xbf16>,
    %c0_39 = arith.constant 0 : index
    %c0_40 = arith.constant 0 : index
    %49 = vector.load %arg8[%c0_39, %c0_40] : memref<16x512xbf16, #tpu.memory_space<vmem>>, vector<16x384xbf16>
    %c0_41 = arith.constant 0 : index
    %c0_42 = arith.constant 0 : index
    %50 = vector.load %arg7[%c0_41, %c0_42] : memref<144x512xbf16, #tpu.memory_space<vmem>>, vector<16x384xbf16>
    tpu.vector_store %arg7[%c0_41, %c0_42], %49 {strides = array<i32>} : memref<144x512xbf16, #tpu.memory_space<vmem>>, vector<16x384xbf16>,
    %c0_43 = arith.constant 0 : index
    %c1_44 = arith.constant 1 : index
    %51 = vector.load %arg8[%c0_43, %c1_44] : memref<16x512xbf16, #tpu.memory_space<vmem>>, vector<16x384xbf16>
    %c16_45 = arith.constant 16 : index
    %c0_46 = arith.constant 0 : index
    %52 = vector.load %arg7[%c16_45, %c0_46] : memref<144x512xbf16, #tpu.memory_space<vmem>>, vector<16x384xbf16>
    tpu.vector_store %arg7[%c16_45, %c0_46], %51 {strides = array<i32>} : memref<144x512xbf16, #tpu.memory_space<vmem>>, vector<16x384xbf16>,
    %c0_47 = arith.constant 0 : index
    %c2_48 = arith.constant 2 : index
    %53 = vector.load %arg8[%c0_47, %c2_48] : memref<16x512xbf16, #tpu.memory_space<vmem>>, vector<16x384xbf16>
    %c32_49 = arith.constant 32 : index
    %c0_50 = arith.constant 0 : index
    %54 = vector.load %arg7[%c32_49, %c0_50] : memref<144x512xbf16, #tpu.memory_space<vmem>>, vector<16x384xbf16>
    tpu.vector_store %arg7[%c32_49, %c0_50], %53 {strides = array<i32>} : memref<144x512xbf16, #tpu.memory_space<vmem>>, vector<16x384xbf16>,
    %c0_51 = arith.constant 0 : index
    %c18_52 = arith.constant 18 : index
    %55 = vector.load %arg8[%c0_51, %c18_52] : memref<16x512xbf16, #tpu.memory_space<vmem>>, vector<16x384xbf16>
    %c48_53 = arith.constant 48 : index
    %c0_54 = arith.constant 0 : index
    %56 = vector.load %arg7[%c48_53, %c0_54] : memref<144x512xbf16, #tpu.memory_space<vmem>>, vector<16x384xbf16>
    tpu.vector_store %arg7[%c48_53, %c0_54], %55 {strides = array<i32>} : memref<144x512xbf16, #tpu.memory_space<vmem>>, vector<16x384xbf16>,
    %c0_55 = arith.constant 0 : index
    %c19_56 = arith.constant 19 : index
    %57 = vector.load %arg8[%c0_55, %c19_56] : memref<16x512xbf16, #tpu.memory_space<vmem>>, vector<16x384xbf16>
    %c64_57 = arith.constant 64 : index
    %c0_58 = arith.constant 0 : index
    %58 = vector.load %arg7[%c64_57, %c0_58] : memref<144x512xbf16, #tpu.memory_space<vmem>>, vector<16x384xbf16>
    tpu.vector_store %arg7[%c64_57, %c0_58], %57 {strides = array<i32>} : memref<144x512xbf16, #tpu.memory_space<vmem>>, vector<16x384xbf16>,
    %c0_59 = arith.constant 0 : index
    %c20_60 = arith.constant 20 : index
    %59 = vector.load %arg8[%c0_59, %c20_60] : memref<16x512xbf16, #tpu.memory_space<vmem>>, vector<16x384xbf16>
    %c80_61 = arith.constant 80 : index
    %c0_62 = arith.constant 0 : index
    %60 = vector.load %arg7[%c80_61, %c0_62] : memref<144x512xbf16, #tpu.memory_space<vmem>>, vector<16x384xbf16>
    tpu.vector_store %arg7[%c80_61, %c0_62], %59 {strides = array<i32>} : memref<144x512xbf16, #tpu.memory_space<vmem>>, vector<16x384xbf16>,
    %c0_63 = arith.constant 0 : index
    %c36_64 = arith.constant 36 : index
    %61 = vector.load %arg8[%c0_63, %c36_64] : memref<16x512xbf16, #tpu.memory_space<vmem>>, vector<16x384xbf16>
    %c96_65 = arith.constant 96 : index
    %c0_66 = arith.constant 0 : index
    %62 = vector.load %arg7[%c96_65, %c0_66] : memref<144x512xbf16, #tpu.memory_space<vmem>>, vector<16x384xbf16>
    tpu.vector_store %arg7[%c96_65, %c0_66], %61 {strides = array<i32>} : memref<144x512xbf16, #tpu.memory_space<vmem>>, vector<16x384xbf16>,
    %c0_67 = arith.constant 0 : index
    %c37_68 = arith.constant 37 : index
    %63 = vector.load %arg8[%c0_67, %c37_68] : memref<16x512xbf16, #tpu.memory_space<vmem>>, vector<16x384xbf16>
    %c112_69 = arith.constant 112 : index
    %c0_70 = arith.constant 0 : index
    %64 = vector.load %arg7[%c112_69, %c0_70] : memref<144x512xbf16, #tpu.memory_space<vmem>>, vector<16x384xbf16>
    tpu.vector_store %arg7[%c112_69, %c0_70], %63 {strides = array<i32>} : memref<144x512xbf16, #tpu.memory_space<vmem>>, vector<16x384xbf16>,
    %c0_71 = arith.constant 0 : index
    %c38_72 = arith.constant 38 : index
    %65 = vector.load %arg8[%c0_71, %c38_72] : memref<16x512xbf16, #tpu.memory_space<vmem>>, vector<16x384xbf16>
    %c128_73 = arith.constant 128 : index
    %c0_74 = arith.constant 0 : index
    %66 = vector.load %arg7[%c128_73, %c0_74] : memref<144x512xbf16, #tpu.memory_space<vmem>>, vector<16x384xbf16>
    tpu.vector_store %arg7[%c128_73, %c0_74], %65 {strides = array<i32>} : memref<144x512xbf16, #tpu.memory_space<vmem>>, vector<16x384xbf16>,
    %c0_75 = arith.constant 0 : index
    %c0_76 = arith.constant 0 : index
    %67 = vector.load %arg4[%c0_75, %c0_76] : memref<16x144xbf16, #tpu.memory_space<vmem>>, vector<16x144xbf16>
    %c0_77 = arith.constant 0 : index
    %c0_78 = arith.constant 0 : index
    %68 = vector.load %arg7[%c0_77, %c0_78] : memref<144x512xbf16, #tpu.memory_space<vmem>>, vector<144x384xbf16>
    %cst_79 = arith.constant dense<0.000000e+00> : vector<16x384xf32>
    %69 = tpu.matmul %67, %68, %cst_79 {dimension_numbers = #tpu.dot_dimension_numbers<[1], [0], [0], [1], [0, 0, 1, 1], [], []>} : vector<16x144xbf16>, vector<144x384xbf16>, vector<16x384xf32> -> vector<16x384xf32>
    %c0_80 = arith.constant 0 : index
    %c0_81 = arith.constant 0 : index
    %c38_82 = arith.constant 38 : index
    %70 = vector.load %arg2[%c0_80, %c0_81, %c38_82] : memref<1x16x640xf32, #tpu.memory_space<vmem>>, vector<1x16x384xf32>
    %71 = vector.shape_cast %70 : vector<1x16x384xf32> to vector<16x384xf32>
    %c0_83 = arith.constant 0 : index
    %c1_84 = arith.constant 1 : index
    %72 = vector.load %arg5[%c0_83, %c1_84] : memref<16x2xf32, #tpu.memory_space<vmem>>, vector<16x1xf32>
    %73 = vector.broadcast %72 : vector<16x1xf32> to vector<16x384xf32>
    %74 = arith.addf %69, %73 : vector<16x384xf32>
    %75 = arith.addf %74, %71 : vector<16x384xf32>
    %cst_85 = arith.constant 0.000000e+00 : f32
    %76 = vector.broadcast %cst_85 : f32 to vector<16x384xf32>
    %77 = arith.maximumf %75, %76 : vector<16x384xf32>
    %c0_86 = arith.constant 0 : index
    %c0_87 = arith.constant 0 : index
    %c0_88 = arith.constant 0 : index
    %78 = vector.load %arg6[%c0_86, %c0_87, %c0_88] : memref<1x16x384xf32, #tpu.memory_space<vmem>>, vector<1x16x384xf32>
    %79 = vector.shape_cast %78 : vector<1x16x384xf32> to vector<16x384xf32>
    %80 = vector.shape_cast %77 : vector<16x384xf32> to vector<1x16x384xf32>
    tpu.vector_store %arg6[%c0_86, %c0_87, %c0_88], %80 {strides = array<i32>} : memref<1x16x384xf32, #tpu.memory_space<vmem>>, vector<1x16x384xf32>,
    return
  }
  func.func @transform_0(%arg0: i32) -> (i32, i32) {
    %c0_i32 = arith.constant 0 : i32
    %c0_i32_0 = arith.constant 0 : i32
    %c0_i32_1 = arith.constant 0 : i32
    return %c0_i32, %c0_i32_0 : i32, i32
  }
  func.func @transform_1(%arg0: i32) -> (i32, i32, i32) {
    %c0_i32 = arith.constant 0 : i32
    %c0_i32_0 = arith.constant 0 : i32
    %c0_i32_1 = arith.constant 0 : i32
    return %arg0, %c0_i32, %c0_i32_0 : i32, i32, i32
  }
  func.func @transform_2(%arg0: i32) -> (i32, i32) {
    %c0_i32 = arith.constant 0 : i32
    %c0_i32_0 = arith.constant 0 : i32
    %c0_i32_1 = arith.constant 0 : i32
    return %c0_i32, %c0_i32_0 : i32, i32
  }
  func.func @transform_3(%arg0: i32) -> (i32, i32) {
    %c0_i32 = arith.constant 0 : i32
    %c0_i32_0 = arith.constant 0 : i32
    %c0_i32_1 = arith.constant 0 : i32
    return %c0_i32, %c0_i32_0 : i32, i32
  }
  func.func @transform_4(%arg0: i32) -> (i32, i32) {
    %c0_i32 = arith.constant 0 : i32
    %c0_i32_0 = arith.constant 0 : i32
    %c0_i32_1 = arith.constant 0 : i32
    return %c0_i32, %c0_i32_0 : i32, i32
  }
  func.func @transform_5(%arg0: i32) -> (i32, i32, i32) {
    %c0_i32 = arith.constant 0 : i32
    %c0_i32_0 = arith.constant 0 : i32
    %c0_i32_1 = arith.constant 0 : i32
    return %arg0, %c0_i32, %c0_i32_0 : i32, i32, i32
  }
}

</mosaic_0001>

<llo_original>
// kernel: tpu_custom_call.1
$region0: #{tpu_custom_call.1}
  #allocation0 [shape = 'u32[]', space=smem, size = 0x4, offset = 0x4, fixed_abs, tag = 'smem constant byte address 0x4 - core index']
  #allocation1 [shape = 'u32[144,128]{1,0:T(1,128)}', space=vmem, size = 0x12000, scoped, tag = 'internal scratch']
  #allocation2 [shape = 'bf16[144,512]{1,0:T(8,128)(2,1)}', space=vmem, size = 0x24000, scoped, tag = 'scratch operand']
  #allocation3 [shape = 'bf16[16,512]{1,0:T(8,128)(2,1)}', space=vmem, size = 0x4000, scoped, tag = 'scratch operand']
  %s0 = inlined_call_operand.vmem [shape: f32[1,512], index: 0, kind: input, shape index: {}]
  %s1 = inlined_call_operand.hbm [shape: f32[2,16,640], index: 1, kind: input, shape index: {}]
  %s2 = inlined_call_operand.vmem [shape: bf16[16,144], index: 2, kind: input, shape index: {}]
  %s3 = inlined_call_operand.hbm [shape: bf16[16,144], index: 3, kind: input, shape index: {}]
  %s4 = inlined_call_operand.vmem [shape: f32[16,2], index: 4, kind: input, shape index: {}]
  %s5 = inlined_call_operand.hbm [shape: f32[2,16,384], index: 5, kind: output, shape index: {}]
  %s6 = sld [smem:[#allocation0]]
  $region61: #{tpu_custom_call.1} parent=0
    _
  %s8 = ssub.s32 1, %s6
  %s9 = scalar_select 0, %s8, %s6
  $region1: #{tpu_custom_call.1} parent=0
    #allocation4 [shape = 'u8[81920]{0}', space=vmem, size = 0x14000, scoped, tag = 'input window, operand 1']
    #allocation5 [shape = 's32[2]{0}', space=sflag, size = 0x8, scoped, tag = 'scoped memory for tpu_custom_call.1']
    #allocation6 [shape = 's32[2]{0}', space=sflag, size = 0x8, scoped, tag = 'scoped memory for tpu_custom_call.1']
    #allocation7 [shape = 'u8[8192]{0}', space=vmem, size = 0x2000, scoped, tag = 'input window, operand 3, single buffered']
    #allocation8 [shape = 's32[1]{0}', space=sflag, size = 0x4, scoped, tag = 'scoped memory for tpu_custom_call.1']
    #allocation9 [shape = 'u8[49152]{0}', space=vmem, size = 0xc000, scoped, tag = 'output window, operand 0']
    %10 = vsyncpa [#allocation5], 0
    %s11 = scalar_lea.sflag [#allocation5], 1
    %12 = vsyncpa %s11, 0
    %13 = vsyncpa [#allocation8], 0
    %14 = vsyncpa [#allocation6], 0
    %s15 = scalar_lea.sflag [#allocation6], 1
    %16 = vsyncpa %s15, 0
    loop: start=0, step=1, limit=4
    $region2: #{tpu_custom_call.1} parent=1 // loop_pre_header
      _
    $region3: #{tpu_custom_call.1} parent=1 // loop_header
      %s18 = sphi 0, %s22
      %p19 = scmp.ge.s32.totalorder %s18, 4
      %s26 = sphi 0, %s26
      %s28 = sphi 0, %s26
      %s29 = sphi 0, %s28
      %s43 = sphi 0, %s29
      %s49 = sphi 0, %s51
      %s52 = sphi 0, %s49
      %s53 = sphi 0, %s52
      %s69 = sphi 0, %s53
      %s73 = sphi 0, %s73
      %s75 = sphi 0, %s73
      %s76 = sphi 0, %s75
      %s90 = sphi 0, %s76
      %s94 = sphi 0, %s94
      %s96 = sphi 0, %s94
      %s97 = sphi 0, %s96
      %s111 = sphi 0, %s97
      %s115 = sphi 0, %s115
      %s117 = sphi 0, %s115
      %s118 = sphi 0, %s117
      %s132 = sphi 0, %s118
      %s138 = sphi 0, %s140
      %s141 = sphi 0, %s138
      %s142 = sphi 0, %s141
      %s158 = sphi 0, %s142
    $region4: #{tpu_custom_call.1} parent=1 // loop_header_branch
      %21 = sbr.rel (%p19) target = $region8
    $region5: #{tpu_custom_call.1} parent=1 // loop_body
      %s23 = ssub.s32 %s18, 1
      %s24 = ssub.s32 %s18, 2
      %s25 = sadd.s32 %s18, 1
      %s27 = sadd.s32 %s26, 1
      %p30 = scmp.eq.s32.totalorder %s18, 1
      %p31 = scmp.ne.s32.totalorder %s26, %s28
      %p32 = scmp.eq.s32.totalorder %s18, 0
      %p33 = por %p31, %p32
      %p34 = scmp.ne.s32.totalorder %s26, %s28
      %p35 = scmp.eq.s32.totalorder %s23, 1
      %p36 = por %p34, %p35
      %p37 = scmp.ne.s32.totalorder %s28, %s29
      %p38 = scmp.eq.s32.totalorder %s23, 0
      %p39 = por %p37, %p38
      %p40 = scmp.ne.s32.totalorder %s28, %s29
      %p41 = scmp.eq.s32.totalorder %s24, 1
      %p42 = por %p40, %p41
      %p44 = scmp.ne.s32.totalorder %s29, %s43
      %p45 = scmp.eq.s32.totalorder %s24, 0
      %p46 = por %p44, %p45
      %s47 = ssub.s32 %s18, %s25
      %p48 = scmp.eq.s32.totalorder %s47, 0
      %s50 = sadd.s32 %s49, 1
      %s51 = scalar_select %p48, %s49, %s50
      %p54 = pneg %p48
      %p55 = scmp.eq.s32.totalorder %s18, 1
      %p56 = por %p54, %p55
      %p57 = scmp.ne.s32.totalorder %s49, %s52
      %p58 = scmp.eq.s32.totalorder %s18, 0
      %p59 = por %p57, %p58
      %p60 = scmp.ne.s32.totalorder %s49, %s52
      %p61 = scmp.eq.s32.totalorder %s23, 1
      %p62 = por %p60, %p61
      %p63 = scmp.ne.s32.totalorder %s52, %s53
      %p64 = scmp.eq.s32.totalorder %s23, 0
      %p65 = por %p63, %p64
      %p66 = scmp.ne.s32.totalorder %s52, %s53
      %p67 = scmp.eq.s32.totalorder %s24, 1
      %p68 = por %p66, %p67
      %p70 = scmp.ne.s32.totalorder %s53, %s69
      %p71 = scmp.eq.s32.totalorder %s24, 0
      %p72 = por %p70, %p71
      %s74 = sadd.s32 %s73, 1
      %p77 = scmp.eq.s32.totalorder %s18, 1
      %p78 = scmp.ne.s32.totalorder %s73, %s75
      %p79 = scmp.eq.s32.totalorder %s18, 0
      %p80 = por %p78, %p79
      %p81 = scmp.ne.s32.totalorder %s73, %s75
      %p82 = scmp.eq.s32.totalorder %s23, 1
      %p83 = por %p81, %p82
      %p84 = scmp.ne.s32.totalorder %s75, %s76
      %p85 = scmp.eq.s32.totalorder %s23, 0
      %p86 = por %p84, %p85
      %p87 = scmp.ne.s32.totalorder %s75, %s76
      %p88 = scmp.eq.s32.totalorder %s24, 1
      %p89 = por %p87, %p88
      %p91 = scmp.ne.s32.totalorder %s76, %s90
      %p92 = scmp.eq.s32.totalorder %s24, 0
      %p93 = por %p91, %p92
      %s95 = sadd.s32 %s94, 1
      %p98 = scmp.eq.s32.totalorder %s18, 1
      %p99 = scmp.ne.s32.totalorder %s94, %s96
      %p100 = scmp.eq.s32.totalorder %s18, 0
      %p101 = por %p99, %p100
      %p102 = scmp.ne.s32.totalorder %s94, %s96
      %p103 = scmp.eq.s32.totalorder %s23, 1
      %p104 = por %p102, %p103
      %p105 = scmp.ne.s32.totalorder %s96, %s97
      %p106 = scmp.eq.s32.totalorder %s23, 0
      %p107 = por %p105, %p106
      %p108 = scmp.ne.s32.totalorder %s96, %s97
      %p109 = scmp.eq.s32.totalorder %s24, 1
      %p110 = por %p108, %p109
      %p112 = scmp.ne.s32.totalorder %s97, %s111
      %p113 = scmp.eq.s32.totalorder %s24, 0
      %p114 = por %p112, %p113
      %s116 = sadd.s32 %s115, 1
      %p119 = scmp.eq.s32.totalorder %s18, 1
      %p120 = scmp.ne.s32.totalorder %s115, %s117
      %p121 = scmp.eq.s32.totalorder %s18, 0
      %p122 = por %p120, %p121
      %p123 = scmp.ne.s32.totalorder %s115, %s117
      %p124 = scmp.eq.s32.totalorder %s23, 1
      %p125 = por %p123, %p124
      %p126 = scmp.ne.s32.totalorder %s117, %s118
      %p127 = scmp.eq.s32.totalorder %s23, 0
      %p128 = por %p126, %p127
      %p129 = scmp.ne.s32.totalorder %s117, %s118
      %p130 = scmp.eq.s32.totalorder %s24, 1
      %p131 = por %p129, %p130
      %p133 = scmp.ne.s32.totalorder %s118, %s132
      %p134 = scmp.eq.s32.totalorder %s24, 0
      %p135 = por %p133, %p134
      %s136 = ssub.s32 %s18, %s25
      %p137 = scmp.eq.s32.totalorder %s136, 0
      %s139 = sadd.s32 %s138, 1
      %s140 = scalar_select %p137, %s138, %s139
      %p143 = pneg %p137
      %p144 = scmp.eq.s32.totalorder %s18, 1
      %p145 = por %p143, %p144
      %p146 = scmp.ne.s32.totalorder %s138, %s141
      %p147 = scmp.eq.s32.totalorder %s18, 0
      %p148 = por %p146, %p147
      %p149 = scmp.ne.s32.totalorder %s138, %s141
      %p150 = scmp.eq.s32.totalorder %s23, 1
      %p151 = por %p149, %p150
      %p152 = scmp.ne.s32.totalorder %s141, %s142
      %p153 = scmp.eq.s32.totalorder %s23, 0
      %p154 = por %p152, %p153
      %p155 = scmp.ne.s32.totalorder %s141, %s142
      %p156 = scmp.eq.s32.totalorder %s24, 1
      %p157 = por %p155, %p156
      %p159 = scmp.ne.s32.totalorder %s142, %s158
      %p160 = scmp.eq.s32.totalorder %s24, 0
      %p161 = por %p159, %p160
      %p162 = scmp.le.s32.totalorder 1, %s18
      %p163 = scmp.lt.s32.totalorder %s18, 3
      %p164 = pnand %p162, %p163
      %p165 = pneg %p164
      // Predicated region
      $region9: #{tpu_custom_call.1} parent=5 // pred_check
        _
      $region10: #{tpu_custom_call.1} parent=5 // pred_check_branch
        %167 = sbr.rel (%p164) target = $region12
      $region11: #{tpu_custom_call.1} parent=5 // pred_region
        %s168 = ssub.s32 %s18, 1
        // Predicated region
        $region13: #{tpu_custom_call.1} parent=11 // pred_check
          %p169 = pneg %p39
        $region14: #{tpu_custom_call.1} parent=11 // pred_check_branch
          %171 = sbr.rel (%p169) target = $region16
        $region15: #{tpu_custom_call.1} parent=11 // pred_region
          _
        $region16: #{tpu_custom_call.1} parent=11 // pred_fallthru
          _
        // Predicated region
        $region17: #{tpu_custom_call.1} parent=11 // pred_check
          %p172 = pneg %p86
        $region18: #{tpu_custom_call.1} parent=11 // pred_check_branch
          %174 = sbr.rel (%p172) target = $region20
        $region19: #{tpu_custom_call.1} parent=11 // pred_region
          _
        $region20: #{tpu_custom_call.1} parent=11 // pred_fallthru
          _
        // Predicated region
        $region21: #{tpu_custom_call.1} parent=11 // pred_check
          %p175 = pneg %p107
        $region22: #{tpu_custom_call.1} parent=11 // pred_check_branch
          %177 = sbr.rel (%p175) target = $region24
        $region23: #{tpu_custom_call.1} parent=11 // pred_region
          %s179 = ssub.s32 256, 256
          %180 = vsyncadd [#allocation8], %s179
          %s181 = sshll.u32 [#allocation7], 4
          %s182 = int_to_ptr.vmem [resolvable:$true] %s181
          %187 = dma.hbm_to_vmem [thread:$0]  %s3, 256, %s182, [#allocation8], 128, 128, 8
        $region24: #{tpu_custom_call.1} parent=11 // pred_fallthru
          _
        // Predicated region
        $region25: #{tpu_custom_call.1} parent=11 // pred_check
          %p188 = pneg %p128
        $region26: #{tpu_custom_call.1} parent=11 // pred_check_branch
          %190 = sbr.rel (%p188) target = $region28
        $region27: #{tpu_custom_call.1} parent=11 // pred_region
          _
        $region28: #{tpu_custom_call.1} parent=11 // pred_fallthru
          _
      $region12: #{tpu_custom_call.1} parent=5 // pred_fallthru
        _
      %p191 = scmp.lt.s32.totalorder %s18, 2
      // Predicated region
      $region29: #{tpu_custom_call.1} parent=5 // pred_check
        %p192 = pneg %p191
      $region30: #{tpu_custom_call.1} parent=5 // pred_check_branch
        %194 = sbr.rel (%p192) target = $region32
      $region31: #{tpu_custom_call.1} parent=5 // pred_region
        // Predicated region
        $region33: #{tpu_custom_call.1} parent=31 // pred_check
          %p195 = pneg %p59
        $region34: #{tpu_custom_call.1} parent=31 // pred_check_branch
          %197 = sbr.rel (%p195) target = $region36
        $region35: #{tpu_custom_call.1} parent=31 // pred_region
          %s198 = sand.u32 %s49, 1
          %s199 = scalar_lea.sflag [#allocation5], %s198
          %s200 = sand.u32 %s49, 1
          %s201 = smul.addr %s200, 80
          %s202 = scalar_lea.vmem [#allocation4], %s201
          %s204 = ssub.s32 1280, 1280
          %205 = vsyncadd %s199, %s204
          %s206 = smul.addr %s18, 10
          %s207 = smul.addr %s206, 128
          %s208 = scalar_lea.hbm %s1, %s207
          %s209 = sshll.u32 %s202, 4
          %s210 = int_to_ptr.vmem [resolvable:$true] %s209
          %215 = dma.hbm_to_vmem [thread:$0]  %s208, 1280, %s210, %s199, 640, 640, 40
        $region36: #{tpu_custom_call.1} parent=31 // pred_fallthru
          _
      $region32: #{tpu_custom_call.1} parent=5 // pred_fallthru
        _
      %p216 = scmp.le.s32.totalorder 1, %s18
      %p217 = scmp.lt.s32.totalorder %s18, 3
      %p218 = pnand %p216, %p217
      %p219 = pneg %p218
      // Predicated region
      $region37: #{tpu_custom_call.1} parent=5 // pred_check
        _
      $region38: #{tpu_custom_call.1} parent=5 // pred_check_branch
        %221 = sbr.rel (%p218) target = $region40
      $region39: #{tpu_custom_call.1} parent=5 // pred_region
        %s222 = ssub.s32 %s18, 1
        %s223 = sand.u32 %s52, 1
        %s224 = scalar_lea.sflag [#allocation5], %s223
        %s225 = sand.u32 %s52, 1
        %s226 = smul.addr %s225, 80
        %s227 = scalar_lea.vmem [#allocation4], %s226
        // Predicated region
        $region41: #{tpu_custom_call.1} parent=39 // pred_check
          %p228 = pneg %p65
        $region42: #{tpu_custom_call.1} parent=39 // pred_check_branch
          %230 = sbr.rel (%p228) target = $region44
        $region43: #{tpu_custom_call.1} parent=39 // pred_region
          %231 = dma.done %s224, 1280
        $region44: #{tpu_custom_call.1} parent=39 // pred_fallthru
          _
        // Predicated region
        $region45: #{tpu_custom_call.1} parent=39 // pred_check
          %p232 = pneg %p107
        $region46: #{tpu_custom_call.1} parent=39 // pred_check_branch
          %234 = sbr.rel (%p232) target = $region48
        $region47: #{tpu_custom_call.1} parent=39 // pred_region
          %235 = dma.done [#allocation8], 256
        $region48: #{tpu_custom_call.1} parent=39 // pred_fallthru
          _
        %p236 = pneg %p39
        %p237 = pneg %p36
        %s238 = sand.u32 %s52, 1
        %s239 = scalar_lea.sflag [#allocation5], %s238
        %s240 = sand.u32 %s52, 1
        %s241 = smul.addr %s240, 80
        %s242 = scalar_lea.vmem [#allocation4], %s241
        %p243 = pneg %p65
        %p244 = pneg %p62
        %p245 = pneg %p86
        %p246 = pneg %p83
        %p247 = pneg %p107
        %p248 = pneg %p104
        %p249 = pneg %p128
        %p250 = pneg %p125
        %p251 = pneg %p154
        %p252 = pneg %p151
        %s253 = sand.u32 %s141, 1
        %s254 = scalar_lea.sflag [#allocation6], %s253
        %s255 = sand.u32 %s141, 1
        %s256 = smul.addr %s255, 48
        %s257 = scalar_lea.vmem [#allocation9], %s256
        %v259 = vld [vmem:[%s227] sm:$0xff]
        %v260 = vld [vmem:[%s227 + $0x8] sm:$0xff]
        %v261 = vld [vmem:[%s227 + $0x10] sm:$0xff]
        %v262 = vld [vmem:[%s227 + $0x18] sm:$0xff]
        %v263 = vld [vmem:[%s227 + $0x28] sm:$0xff]
        %v264 = vld [vmem:[%s227 + $0x30] sm:$0xff]
        %v265 = vld [vmem:[%s227 + $0x38] sm:$0xff]
        %v266 = vld [vmem:[%s227 + $0x40] sm:$0xff]
        %v267 = vpack.c.bf16 %v263, %v259
        %v268 = vpack.c.bf16 %v264, %v260
        %v269 = vpack.c.bf16 %v265, %v261
        %v270 = vpack.c.bf16 %v266, %v262
        %v275 = vunpack.c.l.b16 %v267
        %v276 = vunpack.c.l.b16 %v268
        %v277 = vunpack.c.l.b16 %v269
        %v278 = vunpack.c.l.b16 %v270
        %v279 = vunpack.c.h.b16 %v267
        %v280 = vunpack.c.h.b16 %v268
        %v281 = vunpack.c.h.b16 %v269
        %v282 = vunpack.c.h.b16 %v270
        %v283 = vpack.c.b16 %v276, %v275
        %v284 = vpack.c.b16 %v278, %v277
        %v285 = vpack.c.b16 %v280, %v279
        %v286 = vpack.c.b16 %v282, %v281
        %291 = vst [vmem:[#allocation2] sm:$0xff] %v283
        %292 = vst [vmem:[#allocation2 + $0x8] sm:$0xff] %v284
        %293 = vst [vmem:[#allocation2 + $0x10] sm:$0xff] %v285
        %294 = vst [vmem:[#allocation2 + $0x18] sm:$0xff] %v286
        %v295 = vld [vmem:[%s227] sm:$0xff]
        %v296 = vld [vmem:[%s227 + $0x8] sm:$0xff]
        %v297 = vld [vmem:[%s227 + $0x10] sm:$0xff]
        %v298 = vld [vmem:[%s227 + $0x18] sm:$0xff]
        %v299 = vld [vmem:[%s227 + $0x20] sm:$0xff]
        %v300 = vld [vmem:[%s227 + $0x28] sm:$0xff]
        %v301 = vld [vmem:[%s227 + $0x30] sm:$0xff]
        %v302 = vld [vmem:[%s227 + $0x38] sm:$0xff]
        %v303 = vld [vmem:[%s227 + $0x40] sm:$0xff]
        %v304 = vld [vmem:[%s227 + $0x48] sm:$0xff]
        %v305 = vpack.c.bf16 %v300, %v295
        %v306 = vpack.c.bf16 %v301, %v296
        %v307 = vpack.c.bf16 %v302, %v297
        %v308 = vpack.c.bf16 %v303, %v298
        %v309 = vpack.c.bf16 %v304, %v299
        %v315 = vunpack.c.l.b16 %v305
        %v316 = vunpack.c.l.b16 %v306
        %v317 = vunpack.c.l.b16 %v307
        %v318 = vunpack.c.l.b16 %v308
        %v319 = vunpack.c.l.b16 %v309
        %v320 = vunpack.c.h.b16 %v305
        %v321 = vunpack.c.h.b16 %v306
        %v322 = vunpack.c.h.b16 %v307
        %v323 = vunpack.c.h.b16 %v308
        %v324 = vunpack.c.h.b16 %v309
        %v325 = vpack.c.b16 %v316, %v315
        %v326 = vpack.c.b16 %v318, %v317
        %v327 = vpack.c.b16 %v319, %v319
        %v328 = vpack.c.b16 %v321, %v320
        %v329 = vpack.c.b16 %v323, %v322
        %v330 = vpack.c.b16 %v324, %v324
        %331 = vrot.lane.b32.xlu0 %v325, 127
        %v332 = vpop.permute.xlu0 %331
        %333 = vrot.lane.b32.xlu0 %v326, 127
        %v334 = vpop.permute.xlu0 %333
        %335 = vrot.lane.b32.xlu0 %v327, 127
        %v336 = vpop.permute.xlu0 %335
        %337 = vrot.lane.b32.xlu0 %v328, 127
        %v338 = vpop.permute.xlu0 %337
        %339 = vrot.lane.b32.xlu0 %v329, 127
        %v340 = vpop.permute.xlu0 %339
        %341 = vrot.lane.b32.xlu0 %v330, 127
        %v342 = vpop.permute.xlu0 %341
        %v343 = vrot.slane %v332, 4
        %v344 = vrot.slane %v334, 4
        %v345 = vrot.slane %v336, 4
        %v346 = vrot.slane %v338, 4
        %v347 = vrot.slane %v340, 4
        %v348 = vrot.slane %v342, 4
        %vm349 = vcmask 1043456
        %v350 = vsel %vm349, %v343, %v344
        %vm351 = vcmask 1039360
        %v352 = vsel %vm351, %v332, %v350
        %v353 = vsel %vm349, %v344, %v345
        %v354 = vsel %vm351, %v334, %v353
        %v355 = vsel %vm349, %v346, %v347
        %v356 = vsel %vm351, %v338, %v355
        %v357 = vsel %vm349, %v347, %v348
        %v358 = vsel %vm351, %v340, %v357
        %363 = vst [vmem:[#allocation2 + $0x20] sm:$0xff] %v352
        %364 = vst [vmem:[#allocation2 + $0x28] sm:$0xff] %v354
        %365 = vst [vmem:[#allocation2 + $0x30] sm:$0xff] %v356
        %366 = vst [vmem:[#allocation2 + $0x38] sm:$0xff] %v358
        %v367 = vld [vmem:[%s227] sm:$0xff]
        %v368 = vld [vmem:[%s227 + $0x8] sm:$0xff]
        %v369 = vld [vmem:[%s227 + $0x10] sm:$0xff]
        %v370 = vld [vmem:[%s227 + $0x18] sm:$0xff]
        %v371 = vld [vmem:[%s227 + $0x20] sm:$0xff]
        %v372 = vld [vmem:[%s227 + $0x28] sm:$0xff]
        %v373 = vld [vmem:[%s227 + $0x30] sm:$0xff]
        %v374 = vld [vmem:[%s227 + $0x38] sm:$0xff]
        %v375 = vld [vmem:[%s227 + $0x40] sm:$0xff]
        %v376 = vld [vmem:[%s227 + $0x48] sm:$0xff]
        %v377 = vpack.c.bf16 %v372, %v367
        %v378 = vpack.c.bf16 %v373, %v368
        %v379 = vpack.c.bf16 %v374, %v369
        %v380 = vpack.c.bf16 %v375, %v370
        %v381 = vpack.c.bf16 %v376, %v371
        %v387 = vunpack.c.l.b16 %v377
        %v388 = vunpack.c.l.b16 %v378
        %v389 = vunpack.c.l.b16 %v379
        %v390 = vunpack.c.l.b16 %v380
        %v391 = vunpack.c.l.b16 %v381
        %v392 = vunpack.c.h.b16 %v377
        %v393 = vunpack.c.h.b16 %v378
        %v394 = vunpack.c.h.b16 %v379
        %v395 = vunpack.c.h.b16 %v380
        %v396 = vunpack.c.h.b16 %v381
        %v397 = vpack.c.b16 %v388, %v387
        %v398 = vpack.c.b16 %v390, %v389
        %v399 = vpack.c.b16 %v391, %v391
        %v400 = vpack.c.b16 %v393, %v392
        %v401 = vpack.c.b16 %v395, %v394
        %v402 = vpack.c.b16 %v396, %v396
        %403 = vrot.lane.b32.xlu0 %v397, 126
        %v404 = vpop.permute.xlu0 %403
        %405 = vrot.lane.b32.xlu0 %v398, 126
        %v406 = vpop.permute.xlu0 %405
        %407 = vrot.lane.b32.xlu0 %v399, 126
        %v408 = vpop.permute.xlu0 %407
        %409 = vrot.lane.b32.xlu0 %v400, 126
        %v410 = vpop.permute.xlu0 %409
        %411 = vrot.lane.b32.xlu0 %v401, 126
        %v412 = vpop.permute.xlu0 %411
        %413 = vrot.lane.b32.xlu0 %v402, 126
        %v414 = vpop.permute.xlu0 %413
        %v415 = vrot.slane %v404, 4
        %v416 = vrot.slane %v406, 4
        %v417 = vrot.slane %v408, 4
        %v418 = vrot.slane %v410, 4
        %v419 = vrot.slane %v412, 4
        %v420 = vrot.slane %v414, 4
        %v421 = vsel %vm349, %v415, %v416
        %vm422 = vcmask 1031168
        %v423 = vsel %vm422, %v404, %v421
        %v424 = vsel %vm349, %v416, %v417
        %v425 = vsel %vm422, %v406, %v424
        %v426 = vsel %vm349, %v418, %v419
        %v427 = vsel %vm422, %v410, %v426
        %v428 = vsel %vm349, %v419, %v420
        %v429 = vsel %vm422, %v412, %v428
        %434 = vst [vmem:[#allocation2 + $0x40] sm:$0xff] %v423
        %435 = vst [vmem:[#allocation2 + $0x48] sm:$0xff] %v425
        %436 = vst [vmem:[#allocation2 + $0x50] sm:$0xff] %v427
        %437 = vst [vmem:[#allocation2 + $0x58] sm:$0xff] %v429
        %v438 = vld [vmem:[%s227] sm:$0xff]
        %v439 = vld [vmem:[%s227 + $0x8] sm:$0xff]
        %v440 = vld [vmem:[%s227 + $0x10] sm:$0xff]
        %v441 = vld [vmem:[%s227 + $0x18] sm:$0xff]
        %v442 = vld [vmem:[%s227 + $0x20] sm:$0xff]
        %v443 = vld [vmem:[%s227 + $0x28] sm:$0xff]
        %v444 = vld [vmem:[%s227 + $0x30] sm:$0xff]
        %v445 = vld [vmem:[%s227 + $0x38] sm:$0xff]
        %v446 = vld [vmem:[%s227 + $0x40] sm:$0xff]
        %v447 = vld [vmem:[%s227 + $0x48] sm:$0xff]
        %v448 = vpack.c.bf16 %v443, %v438
        %v449 = vpack.c.bf16 %v444, %v439
        %v450 = vpack.c.bf16 %v445, %v440
        %v451 = vpack.c.bf16 %v446, %v441
        %v452 = vpack.c.bf16 %v447, %v442
        %v458 = vunpack.c.l.b16 %v448
        %v459 = vunpack.c.l.b16 %v449
        %v460 = vunpack.c.l.b16 %v450
        %v461 = vunpack.c.l.b16 %v451
        %v462 = vunpack.c.l.b16 %v452
        %v463 = vunpack.c.h.b16 %v448
        %v464 = vunpack.c.h.b16 %v449
        %v465 = vunpack.c.h.b16 %v450
        %v466 = vunpack.c.h.b16 %v451
        %v467 = vunpack.c.h.b16 %v452
        %v468 = vpack.c.b16 %v459, %v458
        %v469 = vpack.c.b16 %v461, %v460
        %v470 = vpack.c.b16 %v462, %v462
        %v471 = vpack.c.b16 %v464, %v463
        %v472 = vpack.c.b16 %v466, %v465
        %v473 = vpack.c.b16 %v467, %v467
        %474 = vrot.lane.b32.xlu0 %v468, 110
        %v475 = vpop.permute.xlu0 %474
        %476 = vrot.lane.b32.xlu0 %v469, 110
        %v477 = vpop.permute.xlu0 %476
        %478 = vrot.lane.b32.xlu0 %v470, 110
        %v479 = vpop.permute.xlu0 %478
        %480 = vrot.lane.b32.xlu0 %v471, 110
        %v481 = vpop.permute.xlu0 %480
        %482 = vrot.lane.b32.xlu0 %v472, 110
        %v483 = vpop.permute.xlu0 %482
        %484 = vrot.lane.b32.xlu0 %v473, 110
        %v485 = vpop.permute.xlu0 %484
        %v486 = vrot.slane %v475, 4
        %v487 = vrot.slane %v477, 4
        %v488 = vrot.slane %v479, 4
        %v489 = vrot.slane %v481, 4
        %v490 = vrot.slane %v483, 4
        %v491 = vrot.slane %v485, 4
        %v492 = vsel %vm349, %v486, %v487
        %vm493 = vcmask 900096
        %v494 = vsel %vm493, %v475, %v492
        %v495 = vsel %vm349, %v487, %v488
        %v496 = vsel %vm493, %v477, %v495
        %v497 = vsel %vm349, %v489, %v490
        %v498 = vsel %vm493, %v481, %v497
        %v499 = vsel %vm349, %v490, %v491
        %v500 = vsel %vm493, %v483, %v499
        %505 = vst [vmem:[#allocation2 + $0x60] sm:$0xff] %v494
        %506 = vst [vmem:[#allocation2 + $0x68] sm:$0xff] %v496
        %507 = vst [vmem:[#allocation2 + $0x70] sm:$0xff] %v498
        %508 = vst [vmem:[#allocation2 + $0x78] sm:$0xff] %v500
        %v509 = vld [vmem:[%s227] sm:$0xff]
        %v510 = vld [vmem:[%s227 + $0x8] sm:$0xff]
        %v511 = vld [vmem:[%s227 + $0x10] sm:$0xff]
        %v512 = vld [vmem:[%s227 + $0x18] sm:$0xff]
        %v513 = vld [vmem:[%s227 + $0x20] sm:$0xff]
        %v514 = vld [vmem:[%s227 + $0x28] sm:$0xff]
        %v515 = vld [vmem:[%s227 + $0x30] sm:$0xff]
        %v516 = vld [vmem:[%s227 + $0x38] sm:$0xff]
        %v517 = vld [vmem:[%s227 + $0x40] sm:$0xff]
        %v518 = vld [vmem:[%s227 + $0x48] sm:$0xff]
        %v519 = vpack.c.bf16 %v514, %v509
        %v520 = vpack.c.bf16 %v515, %v510
        %v521 = vpack.c.bf16 %v516, %v511
        %v522 = vpack.c.bf16 %v517, %v512
        %v523 = vpack.c.bf16 %v518, %v513
        %v529 = vunpack.c.l.b16 %v519
        %v530 = vunpack.c.l.b16 %v520
        %v531 = vunpack.c.l.b16 %v521
        %v532 = vunpack.c.l.b16 %v522
        %v533 = vunpack.c.l.b16 %v523
        %v534 = vunpack.c.h.b16 %v519
        %v535 = vunpack.c.h.b16 %v520
        %v536 = vunpack.c.h.b16 %v521
        %v537 = vunpack.c.h.b16 %v522
        %v538 = vunpack.c.h.b16 %v523
        %v539 = vpack.c.b16 %v530, %v529
        %v540 = vpack.c.b16 %v532, %v531
        %v541 = vpack.c.b16 %v533, %v533
        %v542 = vpack.c.b16 %v535, %v534
        %v543 = vpack.c.b16 %v537, %v536
        %v544 = vpack.c.b16 %v538, %v538
        %545 = vrot.lane.b32.xlu0 %v539, 109
        %v546 = vpop.permute.xlu0 %545
        %547 = vrot.lane.b32.xlu0 %v540, 109
        %v548 = vpop.permute.xlu0 %547
        %549 = vrot.lane.b32.xlu0 %v541, 109
        %v550 = vpop.permute.xlu0 %549
        %551 = vrot.lane.b32.xlu0 %v542, 109
        %v552 = vpop.permute.xlu0 %551
        %553 = vrot.lane.b32.xlu0 %v543, 109
        %v554 = vpop.permute.xlu0 %553
        %555 = vrot.lane.b32.xlu0 %v544, 109
        %v556 = vpop.permute.xlu0 %555
        %v557 = vrot.slane %v546, 4
        %v558 = vrot.slane %v548, 4
        %v559 = vrot.slane %v550, 4
        %v560 = vrot.slane %v552, 4
        %v561 = vrot.slane %v554, 4
        %v562 = vrot.slane %v556, 4
        %v563 = vsel %vm349, %v557, %v558
        %vm564 = vcmask 891904
        %v565 = vsel %vm564, %v546, %v563
        %v566 = vsel %vm349, %v558, %v559
        %v567 = vsel %vm564, %v548, %v566
        %v568 = vsel %vm349, %v560, %v561
        %v569 = vsel %vm564, %v552, %v568
        %v570 = vsel %vm349, %v561, %v562
        %v571 = vsel %vm564, %v554, %v570
        %576 = vst [vmem:[#allocation2 + $0x80] sm:$0xff] %v565
        %577 = vst [vmem:[#allocation2 + $0x88] sm:$0xff] %v567
        %578 = vst [vmem:[#allocation2 + $0x90] sm:$0xff] %v569
        %579 = vst [vmem:[#allocation2 + $0x98] sm:$0xff] %v571
        %v580 = vld [vmem:[%s227] sm:$0xff]
        %v581 = vld [vmem:[%s227 + $0x8] sm:$0xff]
        %v582 = vld [vmem:[%s227 + $0x10] sm:$0xff]
        %v583 = vld [vmem:[%s227 + $0x18] sm:$0xff]
        %v584 = vld [vmem:[%s227 + $0x20] sm:$0xff]
        %v585 = vld [vmem:[%s227 + $0x28] sm:$0xff]
        %v586 = vld [vmem:[%s227 + $0x30] sm:$0xff]
        %v587 = vld [vmem:[%s227 + $0x38] sm:$0xff]
        %v588 = vld [vmem:[%s227 + $0x40] sm:$0xff]
        %v589 = vld [vmem:[%s227 + $0x48] sm:$0xff]
        %v590 = vpack.c.bf16 %v585, %v580
        %v591 = vpack.c.bf16 %v586, %v581
        %v592 = vpack.c.bf16 %v587, %v582
        %v593 = vpack.c.bf16 %v588, %v583
        %v594 = vpack.c.bf16 %v589, %v584
        %v600 = vunpack.c.l.b16 %v590
        %v601 = vunpack.c.l.b16 %v591
        %v602 = vunpack.c.l.b16 %v592
        %v603 = vunpack.c.l.b16 %v593
        %v604 = vunpack.c.l.b16 %v594
        %v605 = vunpack.c.h.b16 %v590
        %v606 = vunpack.c.h.b16 %v591
        %v607 = vunpack.c.h.b16 %v592
        %v608 = vunpack.c.h.b16 %v593
        %v609 = vunpack.c.h.b16 %v594
        %v610 = vpack.c.b16 %v601, %v600
        %v611 = vpack.c.b16 %v603, %v602
        %v612 = vpack.c.b16 %v604, %v604
        %v613 = vpack.c.b16 %v606, %v605
        %v614 = vpack.c.b16 %v608, %v607
        %v615 = vpack.c.b16 %v609, %v609
        %616 = vrot.lane.b32.xlu0 %v610, 108
        %v617 = vpop.permute.xlu0 %616
        %618 = vrot.lane.b32.xlu0 %v611, 108
        %v619 = vpop.permute.xlu0 %618
        %620 = vrot.lane.b32.xlu0 %v612, 108
        %v621 = vpop.permute.xlu0 %620
        %622 = vrot.lane.b32.xlu0 %v613, 108
        %v623 = vpop.permute.xlu0 %622
        %624 = vrot.lane.b32.xlu0 %v614, 108
        %v625 = vpop.permute.xlu0 %624
        %626 = vrot.lane.b32.xlu0 %v615, 108
        %v627 = vpop.permute.xlu0 %626
        %v628 = vrot.slane %v617, 4
        %v629 = vrot.slane %v619, 4
        %v630 = vrot.slane %v621, 4
        %v631 = vrot.slane %v623, 4
        %v632 = vrot.slane %v625, 4
        %v633 = vrot.slane %v627, 4
        %v634 = vsel %vm349, %v628, %v629
        %vm635 = vcmask 883712
        %v636 = vsel %vm635, %v617, %v634
        %v637 = vsel %vm349, %v629, %v630
        %v638 = vsel %vm635, %v619, %v637
        %v639 = vsel %vm349, %v631, %v632
        %v640 = vsel %vm635, %v623, %v639
        %v641 = vsel %vm349, %v632, %v633
        %v642 = vsel %vm635, %v625, %v641
        %647 = vst [vmem:[#allocation2 + $0xa0] sm:$0xff] %v636
        %648 = vst [vmem:[#allocation2 + $0xa8] sm:$0xff] %v638
        %649 = vst [vmem:[#allocation2 + $0xb0] sm:$0xff] %v640
        %650 = vst [vmem:[#allocation2 + $0xb8] sm:$0xff] %v642
        %v651 = vld [vmem:[%s227] sm:$0xff]
        %v652 = vld [vmem:[%s227 + $0x8] sm:$0xff]
        %v653 = vld [vmem:[%s227 + $0x10] sm:$0xff]
        %v654 = vld [vmem:[%s227 + $0x18] sm:$0xff]
        %v655 = vld [vmem:[%s227 + $0x20] sm:$0xff]
        %v656 = vld [vmem:[%s227 + $0x28] sm:$0xff]
        %v657 = vld [vmem:[%s227 + $0x30] sm:$0xff]
        %v658 = vld [vmem:[%s227 + $0x38] sm:$0xff]
        %v659 = vld [vmem:[%s227 + $0x40] sm:$0xff]
        %v660 = vld [vmem:[%s227 + $0x48] sm:$0xff]
        %v661 = vpack.c.bf16 %v656, %v651
        %v662 = vpack.c.bf16 %v657, %v652
        %v663 = vpack.c.bf16 %v658, %v653
        %v664 = vpack.c.bf16 %v659, %v654
        %v665 = vpack.c.bf16 %v660, %v655
        %v671 = vunpack.c.l.b16 %v661
        %v672 = vunpack.c.l.b16 %v662
        %v673 = vunpack.c.l.b16 %v663
        %v674 = vunpack.c.l.b16 %v664
        %v675 = vunpack.c.l.b16 %v665
        %v676 = vunpack.c.h.b16 %v661
        %v677 = vunpack.c.h.b16 %v662
        %v678 = vunpack.c.h.b16 %v663
        %v679 = vunpack.c.h.b16 %v664
        %v680 = vunpack.c.h.b16 %v665
        %v681 = vpack.c.b16 %v672, %v671
        %v682 = vpack.c.b16 %v674, %v673
        %v683 = vpack.c.b16 %v675, %v675
        %v684 = vpack.c.b16 %v677, %v676
        %v685 = vpack.c.b16 %v679, %v678
        %v686 = vpack.c.b16 %v680, %v680
        %687 = vrot.lane.b32.xlu0 %v681, 92
        %v688 = vpop.permute.xlu0 %687
        %689 = vrot.lane.b32.xlu0 %v682, 92
        %v690 = vpop.permute.xlu0 %689
        %691 = vrot.lane.b32.xlu0 %v683, 92
        %v692 = vpop.permute.xlu0 %691
        %693 = vrot.lane.b32.xlu0 %v684, 92
        %v694 = vpop.permute.xlu0 %693
        %695 = vrot.lane.b32.xlu0 %v685, 92
        %v696 = vpop.permute.xlu0 %695
        %697 = vrot.lane.b32.xlu0 %v686, 92
        %v698 = vpop.permute.xlu0 %697
        %v699 = vrot.slane %v688, 4
        %v700 = vrot.slane %v690, 4
        %v701 = vrot.slane %v692, 4
        %v702 = vrot.slane %v694, 4
        %v703 = vrot.slane %v696, 4
        %v704 = vrot.slane %v698, 4
        %v705 = vsel %vm349, %v699, %v700
        %vm706 = vcmask 752640
        %v707 = vsel %vm706, %v688, %v705
        %v708 = vsel %vm349, %v700, %v701
        %v709 = vsel %vm706, %v690, %v708
        %v710 = vsel %vm349, %v702, %v703
        %v711 = vsel %vm706, %v694, %v710
        %v712 = vsel %vm349, %v703, %v704
        %v713 = vsel %vm706, %v696, %v712
        %718 = vst [vmem:[#allocation2 + $0xc0] sm:$0xff] %v707
        %719 = vst [vmem:[#allocation2 + $0xc8] sm:$0xff] %v709
        %720 = vst [vmem:[#allocation2 + $0xd0] sm:$0xff] %v711
        %721 = vst [vmem:[#allocation2 + $0xd8] sm:$0xff] %v713
        %v722 = vld [vmem:[%s227] sm:$0xff]
        %v723 = vld [vmem:[%s227 + $0x8] sm:$0xff]
        %v724 = vld [vmem:[%s227 + $0x10] sm:$0xff]
        %v725 = vld [vmem:[%s227 + $0x18] sm:$0xff]
        %v726 = vld [vmem:[%s227 + $0x20] sm:$0xff]
        %v727 = vld [vmem:[%s227 + $0x28] sm:$0xff]
        %v728 = vld [vmem:[%s227 + $0x30] sm:$0xff]
        %v729 = vld [vmem:[%s227 + $0x38] sm:$0xff]
        %v730 = vld [vmem:[%s227 + $0x40] sm:$0xff]
        %v731 = vld [vmem:[%s227 + $0x48] sm:$0xff]
        %v732 = vpack.c.bf16 %v727, %v722
        %v733 = vpack.c.bf16 %v728, %v723
        %v734 = vpack.c.bf16 %v729, %v724
        %v735 = vpack.c.bf16 %v730, %v725
        %v736 = vpack.c.bf16 %v731, %v726
        %v742 = vunpack.c.l.b16 %v732
        %v743 = vunpack.c.l.b16 %v733
        %v744 = vunpack.c.l.b16 %v734
        %v745 = vunpack.c.l.b16 %v735
        %v746 = vunpack.c.l.b16 %v736
        %v747 = vunpack.c.h.b16 %v732
        %v748 = vunpack.c.h.b16 %v733
        %v749 = vunpack.c.h.b16 %v734
        %v750 = vunpack.c.h.b16 %v735
        %v751 = vunpack.c.h.b16 %v736
        %v752 = vpack.c.b16 %v743, %v742
        %v753 = vpack.c.b16 %v745, %v744
        %v754 = vpack.c.b16 %v746, %v746
        %v755 = vpack.c.b16 %v748, %v747
        %v756 = vpack.c.b16 %v750, %v749
        %v757 = vpack.c.b16 %v751, %v751
        %758 = vrot.lane.b32.xlu0 %v752, 91
        %v759 = vpop.permute.xlu0 %758
        %760 = vrot.lane.b32.xlu0 %v753, 91
        %v761 = vpop.permute.xlu0 %760
        %762 = vrot.lane.b32.xlu0 %v754, 91
        %v763 = vpop.permute.xlu0 %762
        %764 = vrot.lane.b32.xlu0 %v755, 91
        %v765 = vpop.permute.xlu0 %764
        %766 = vrot.lane.b32.xlu0 %v756, 91
        %v767 = vpop.permute.xlu0 %766
        %768 = vrot.lane.b32.xlu0 %v757, 91
        %v769 = vpop.permute.xlu0 %768
        %v770 = vrot.slane %v759, 4
        %v771 = vrot.slane %v761, 4
        %v772 = vrot.slane %v763, 4
        %v773 = vrot.slane %v765, 4
        %v774 = vrot.slane %v767, 4
        %v775 = vrot.slane %v769, 4
        %v776 = vsel %vm349, %v770, %v771
        %vm777 = vcmask 744448
        %v778 = vsel %vm777, %v759, %v776
        %v779 = vsel %vm349, %v771, %v772
        %v780 = vsel %vm777, %v761, %v779
        %v781 = vsel %vm349, %v773, %v774
        %v782 = vsel %vm777, %v765, %v781
        %v783 = vsel %vm349, %v774, %v775
        %v784 = vsel %vm777, %v767, %v783
        %789 = vst [vmem:[#allocation2 + $0xe0] sm:$0xff] %v778
        %790 = vst [vmem:[#allocation2 + $0xe8] sm:$0xff] %v780
        %791 = vst [vmem:[#allocation2 + $0xf0] sm:$0xff] %v782
        %792 = vst [vmem:[#allocation2 + $0xf8] sm:$0xff] %v784
        %v793 = vld [vmem:[%s227] sm:$0xff]
        %v794 = vld [vmem:[%s227 + $0x8] sm:$0xff]
        %v795 = vld [vmem:[%s227 + $0x10] sm:$0xff]
        %v796 = vld [vmem:[%s227 + $0x18] sm:$0xff]
        %v797 = vld [vmem:[%s227 + $0x20] sm:$0xff]
        %v798 = vld [vmem:[%s227 + $0x28] sm:$0xff]
        %v799 = vld [vmem:[%s227 + $0x30] sm:$0xff]
        %v800 = vld [vmem:[%s227 + $0x38] sm:$0xff]
        %v801 = vld [vmem:[%s227 + $0x40] sm:$0xff]
        %v802 = vld [vmem:[%s227 + $0x48] sm:$0xff]
        %v803 = vpack.c.bf16 %v798, %v793
        %v804 = vpack.c.bf16 %v799, %v794
        %v805 = vpack.c.bf16 %v800, %v795
        %v806 = vpack.c.bf16 %v801, %v796
        %v807 = vpack.c.bf16 %v802, %v797
        %v813 = vunpack.c.l.b16 %v803
        %v814 = vunpack.c.l.b16 %v804
        %v815 = vunpack.c.l.b16 %v805
        %v816 = vunpack.c.l.b16 %v806
        %v817 = vunpack.c.l.b16 %v807
        %v818 = vunpack.c.h.b16 %v803
        %v819 = vunpack.c.h.b16 %v804
        %v820 = vunpack.c.h.b16 %v805
        %v821 = vunpack.c.h.b16 %v806
        %v822 = vunpack.c.h.b16 %v807
        %v823 = vpack.c.b16 %v814, %v813
        %v824 = vpack.c.b16 %v816, %v815
        %v825 = vpack.c.b16 %v817, %v817
        %v826 = vpack.c.b16 %v819, %v818
        %v827 = vpack.c.b16 %v821, %v820
        %v828 = vpack.c.b16 %v822, %v822
        %829 = vrot.lane.b32.xlu0 %v823, 90
        %v830 = vpop.permute.xlu0 %829
        %831 = vrot.lane.b32.xlu0 %v824, 90
        %v832 = vpop.permute.xlu0 %831
        %833 = vrot.lane.b32.xlu0 %v825, 90
        %v834 = vpop.permute.xlu0 %833
        %835 = vrot.lane.b32.xlu0 %v826, 90
        %v836 = vpop.permute.xlu0 %835
        %837 = vrot.lane.b32.xlu0 %v827, 90
        %v838 = vpop.permute.xlu0 %837
        %839 = vrot.lane.b32.xlu0 %v828, 90
        %v840 = vpop.permute.xlu0 %839
        %v841 = vrot.slane %v830, 4
        %v842 = vrot.slane %v832, 4
        %v843 = vrot.slane %v834, 4
        %v844 = vrot.slane %v836, 4
        %v845 = vrot.slane %v838, 4
        %v846 = vrot.slane %v840, 4
        %v847 = vsel %vm349, %v841, %v842
        %vm848 = vcmask 736256
        %v849 = vsel %vm848, %v830, %v847
        %v850 = vsel %vm349, %v842, %v843
        %v851 = vsel %vm848, %v832, %v850
        %v852 = vsel %vm349, %v844, %v845
        %v853 = vsel %vm848, %v836, %v852
        %v854 = vsel %vm349, %v845, %v846
        %v855 = vsel %vm848, %v838, %v854
        %860 = vst [vmem:[#allocation2 + $0x100] sm:$0xff] %v849
        %861 = vst [vmem:[#allocation2 + $0x108] sm:$0xff] %v851
        %862 = vst [vmem:[#allocation2 + $0x110] sm:$0xff] %v853
        %863 = vst [vmem:[#allocation2 + $0x118] sm:$0xff] %v855
        %v864 = vld [vmem:[%s2] sm:$0xff]
        %v865 = vld [vmem:[%s2 + $0x8] sm:$0xff]
        %v866 = vld [vmem:[#allocation2] sm:$0xff]
        %v867 = vld [vmem:[#allocation2 + $0x8] sm:$0xff]
        %v868 = vld [vmem:[#allocation2 + $0x10] sm:$0xff]
        %v869 = vld [vmem:[#allocation2 + $0x18] sm:$0xff]
        %v870 = vld [vmem:[#allocation2 + $0x20] sm:$0xff]
        %v871 = vld [vmem:[#allocation2 + $0x28] sm:$0xff]
        %v872 = vld [vmem:[#allocation2 + $0x30] sm:$0xff]
        %v873 = vld [vmem:[#allocation2 + $0x38] sm:$0xff]
        %v874 = vld [vmem:[#allocation2 + $0x40] sm:$0xff]
        %v875 = vld [vmem:[#allocation2 + $0x48] sm:$0xff]
        %v876 = vld [vmem:[#allocation2 + $0x50] sm:$0xff]
        %v877 = vld [vmem:[#allocation2 + $0x58] sm:$0xff]
        %v878 = vld [vmem:[#allocation2 + $0x60] sm:$0xff]
        %v879 = vld [vmem:[#allocation2 + $0x68] sm:$0xff]
        %v880 = vld [vmem:[#allocation2 + $0x70] sm:$0xff]
        %v881 = vld [vmem:[#allocation2 + $0x78] sm:$0xff]
        %v882 = vld [vmem:[#allocation2 + $0x80] sm:$0xff]
        %v883 = vld [vmem:[#allocation2 + $0x88] sm:$0xff]
        %v884 = vld [vmem:[#allocation2 + $0x90] sm:$0xff]
        %v885 = vld [vmem:[#allocation2 + $0x98] sm:$0xff]
        %v886 = vld [vmem:[#allocation2 + $0xa0] sm:$0xff]
        %v887 = vld [vmem:[#allocation2 + $0xa8] sm:$0xff]
        %v888 = vld [vmem:[#allocation2 + $0xb0] sm:$0xff]
        %v889 = vld [vmem:[#allocation2 + $0xb8] sm:$0xff]
        %v890 = vld [vmem:[#allocation2 + $0xc0] sm:$0xff]
        %v891 = vld [vmem:[#allocation2 + $0xc8] sm:$0xff]
        %v892 = vld [vmem:[#allocation2 + $0xd0] sm:$0xff]
        %v893 = vld [vmem:[#allocation2 + $0xd8] sm:$0xff]
        %v894 = vld [vmem:[#allocation2 + $0xe0] sm:$0xff]
        %v895 = vld [vmem:[#allocation2 + $0xe8] sm:$0xff]
        %v896 = vld [vmem:[#allocation2 + $0xf0] sm:$0xff]
        %v897 = vld [vmem:[#allocation2 + $0xf8] sm:$0xff]
        %v898 = vld [vmem:[#allocation2 + $0x100] sm:$0xff]
        %v899 = vld [vmem:[#allocation2 + $0x108] sm:$0xff]
        %v900 = vld [vmem:[#allocation2 + $0x110] sm:$0xff]
        %v901 = vld [vmem:[#allocation2 + $0x118] sm:$0xff]
        %v902 = vld [vmem:[%s4] sm:$0xff]
        %v903 = vld [vmem:[%s4 + $0x8] sm:$0xff]
        %905 = vset.pattern.permute.xlu0 0
        %906 = vperm.xlu0 %905, %v902
        %v907 = vpop.permute.xlu0 %906
        %910 = vset.pattern.permute.xlu0 0
        %911 = vperm.xlu0 %910, %v903
        %v912 = vpop.permute.xlu0 %911
        %v916 = vunpack.c.l.b16 %v864
        %v917 = vunpack.c.h.b16 %v864
        %v918 = vunpack.c.l.b16 %v865
        %v919 = vunpack.c.h.b16 %v865
        %v920 = vpack.c.b16 %v918, %v916
        %v921 = vpack.c.b16 %v919, %v917
        %v959 = vunpack.c.l.b16 %v866
        %v960 = vunpack.c.h.b16 %v866
        %v961 = vunpack.c.l.b16 %v867
        %v962 = vunpack.c.h.b16 %v867
        %v963 = vunpack.c.l.b16 %v868
        %v964 = vunpack.c.h.b16 %v868
        %v965 = vunpack.c.l.b16 %v869
        %v966 = vunpack.c.h.b16 %v869
        %v967 = vunpack.c.l.b16 %v870
        %v968 = vunpack.c.h.b16 %v870
        %v969 = vunpack.c.l.b16 %v871
        %v970 = vunpack.c.h.b16 %v871
        %v971 = vunpack.c.l.b16 %v872
        %v972 = vunpack.c.h.b16 %v872
        %v973 = vunpack.c.l.b16 %v873
        %v974 = vunpack.c.h.b16 %v873
        %v975 = vunpack.c.l.b16 %v874
        %v976 = vunpack.c.h.b16 %v874
        %v977 = vunpack.c.l.b16 %v875
        %v978 = vunpack.c.h.b16 %v875
        %v979 = vunpack.c.l.b16 %v876
        %v980 = vunpack.c.h.b16 %v876
        %v981 = vunpack.c.l.b16 %v877
        %v982 = vunpack.c.h.b16 %v877
        %v983 = vunpack.c.l.b16 %v878
        %v984 = vunpack.c.h.b16 %v878
        %v985 = vunpack.c.l.b16 %v879
        %v986 = vunpack.c.h.b16 %v879
        %v987 = vunpack.c.l.b16 %v880
        %v988 = vunpack.c.h.b16 %v880
        %v989 = vunpack.c.l.b16 %v881
        %v990 = vunpack.c.h.b16 %v881
        %v991 = vunpack.c.l.b16 %v882
        %v992 = vunpack.c.h.b16 %v882
        %v993 = vunpack.c.l.b16 %v883
        %v994 = vunpack.c.h.b16 %v883
        %v995 = vunpack.c.l.b16 %v884
        %v996 = vunpack.c.h.b16 %v884
        %v997 = vunpack.c.l.b16 %v885
        %v998 = vunpack.c.h.b16 %v885
        %v999 = vunpack.c.l.b16 %v886
        %v1000 = vunpack.c.h.b16 %v886
        %v1001 = vunpack.c.l.b16 %v887
        %v1002 = vunpack.c.h.b16 %v887
        %v1003 = vunpack.c.l.b16 %v888
        %v1004 = vunpack.c.h.b16 %v888
        %v1005 = vunpack.c.l.b16 %v889
        %v1006 = vunpack.c.h.b16 %v889
        %v1007 = vunpack.c.l.b16 %v890
        %v1008 = vunpack.c.h.b16 %v890
        %v1009 = vunpack.c.l.b16 %v891
        %v1010 = vunpack.c.h.b16 %v891
        %v1011 = vunpack.c.l.b16 %v892
        %v1012 = vunpack.c.h.b16 %v892
        %v1013 = vunpack.c.l.b16 %v893
        %v1014 = vunpack.c.h.b16 %v893
        %v1015 = vunpack.c.l.b16 %v894
        %v1016 = vunpack.c.h.b16 %v894
        %v1017 = vunpack.c.l.b16 %v895
        %v1018 = vunpack.c.h.b16 %v895
        %v1019 = vunpack.c.l.b16 %v896
        %v1020 = vunpack.c.h.b16 %v896
        %v1021 = vunpack.c.l.b16 %v897
        %v1022 = vunpack.c.h.b16 %v897
        %v1023 = vunpack.c.l.b16 %v898
        %v1024 = vunpack.c.h.b16 %v898
        %v1025 = vunpack.c.l.b16 %v899
        %v1026 = vunpack.c.h.b16 %v899
        %v1027 = vunpack.c.l.b16 %v900
        %v1028 = vunpack.c.h.b16 %v900
        %v1029 = vunpack.c.l.b16 %v901
        %v1030 = vunpack.c.h.b16 %v901
        %v1031 = vpack.c.b16 %v963, %v959
        %v1032 = vpack.c.b16 %v964, %v960
        %v1033 = vpack.c.b16 %v965, %v961
        %v1034 = vpack.c.b16 %v966, %v962
        %v1035 = vpack.c.b16 %v971, %v967
        %v1036 = vpack.c.b16 %v972, %v968
        %v1037 = vpack.c.b16 %v973, %v969
        %v1038 = vpack.c.b16 %v974, %v970
        %v1039 = vpack.c.b16 %v979, %v975
        %v1040 = vpack.c.b16 %v980, %v976
        %v1041 = vpack.c.b16 %v981, %v977
        %v1042 = vpack.c.b16 %v982, %v978
        %v1043 = vpack.c.b16 %v987, %v983
        %v1044 = vpack.c.b16 %v988, %v984
        %v1045 = vpack.c.b16 %v989, %v985
        %v1046 = vpack.c.b16 %v990, %v986
        %v1047 = vpack.c.b16 %v995, %v991
        %v1048 = vpack.c.b16 %v996, %v992
        %v1049 = vpack.c.b16 %v997, %v993
        %v1050 = vpack.c.b16 %v998, %v994
        %v1051 = vpack.c.b16 %v1003, %v999
        %v1052 = vpack.c.b16 %v1004, %v1000
        %v1053 = vpack.c.b16 %v1005, %v1001
        %v1054 = vpack.c.b16 %v1006, %v1002
        %v1055 = vpack.c.b16 %v1011, %v1007
        %v1056 = vpack.c.b16 %v1012, %v1008
        %v1057 = vpack.c.b16 %v1013, %v1009
        %v1058 = vpack.c.b16 %v1014, %v1010
        %v1059 = vpack.c.b16 %v1019, %v1015
        %v1060 = vpack.c.b16 %v1020, %v1016
        %v1061 = vpack.c.b16 %v1021, %v1017
        %v1062 = vpack.c.b16 %v1022, %v1018
        %v1063 = vpack.c.b16 %v1027, %v1023
        %v1064 = vpack.c.b16 %v1028, %v1024
        %v1065 = vpack.c.b16 %v1029, %v1025
        %v1066 = vpack.c.b16 %v1030, %v1026
        %vm1103 = vcmask 130048
        %v1105 = vsel %vm1103, %v921, 0
        %1107 = vmatprep.subr.bf16.mxu0 %v1060
        %1108 = vmatpush1.bf16.msra.mxu0 %v1059
        %1109 = vmatprep.subr.bf16.mxu0 %v1056
        %1110 = vmatpush1.bf16.msra.mxu0 %v1055
        %1111 = vmatprep.subr.bf16.mxu0 %v1052
        %1112 = vmatpush1.bf16.msra.mxu0 %v1051
        %1113 = vmatprep.subr.bf16.mxu0 %v1048
        %1114 = vmatpush1.bf16.msra.mxu0 %v1047
        %1115 = vmatprep.subr.bf16.mxu0 %v1044
        %1116 = vmatpush1.bf16.msra.mxu0 %v1043
        %1117 = vmatprep.subr.bf16.mxu0 %v1040
        %1118 = vmatpush1.bf16.msra.mxu0 %v1039
        %1119 = vmatprep.subr.bf16.mxu0 %v1036
        %1120 = vmatpush1.bf16.msra.mxu0 %v1035
        %1121 = vmatprep.subr.bf16.mxu0 %v1032
        %1122 = vmatpush1.bf16.msra.mxu0 %v1031
        %1123 = vmatprep.subr.bf16.mxu0 0
        %1124 = vmatpush2.bf16.msra.mxu0 0
        %1125 = vmatprep.subr.bf16.mxu0 0
        %1126 = vmatpush2.bf16.msra.mxu0 0
        %1127 = vmatprep.subr.bf16.mxu0 0
        %1128 = vmatpush2.bf16.msra.mxu0 0
        %1129 = vmatprep.subr.bf16.mxu0 0
        %1130 = vmatpush2.bf16.msra.mxu0 0
        %1131 = vmatprep.subr.bf16.mxu0 0
        %1132 = vmatpush2.bf16.msra.mxu0 0
        %1133 = vmatprep.subr.bf16.mxu0 0
        %1134 = vmatpush2.bf16.msra.mxu0 0
        %1135 = vmatprep.subr.bf16.mxu0 0
        %1136 = vmatpush2.bf16.msra.mxu0 0
        %1137 = vmatprep.subr.bf16.mxu0 %v1064
        %1138 = vmatpush2.bf16.msra.mxu0 %v1063
        %1139 = vmatprep.mubr.bf16.mxu0 %v1105
        %1140 = vmatmul.mubr.bf16.gmra.mxu0 %v920
        %v1141 = vpop.f32.mrf.mxu0
        %v1142 = vadd.f32 %v907, %v1141
        %v1143 = vpop.f32.mrf.mxu0
        %v1144 = vadd.f32 %v907, %v1143
        %v1145 = vpop.f32.mrf.mxu0
        %v1146 = vadd.f32 %v912, %v1145
        %v1147 = vpop.f32.mrf.mxu0
        %v1148 = vadd.f32 %v912, %v1147
        %1149 = vdwg.mxu0
        %1150 = vmatprep.subr.bf16.mxu0 %v1062
        %1151 = vmatpush1.bf16.msra.mxu0 %v1061
        %1152 = vmatprep.subr.bf16.mxu0 %v1058
        %1153 = vmatpush1.bf16.msra.mxu0 %v1057
        %1154 = vmatprep.subr.bf16.mxu0 %v1054
        %1155 = vmatpush1.bf16.msra.mxu0 %v1053
        %1156 = vmatprep.subr.bf16.mxu0 %v1050
        %1157 = vmatpush1.bf16.msra.mxu0 %v1049
        %1158 = vmatprep.subr.bf16.mxu0 %v1046
        %1159 = vmatpush1.bf16.msra.mxu0 %v1045
        %1160 = vmatprep.subr.bf16.mxu0 %v1042
        %1161 = vmatpush1.bf16.msra.mxu0 %v1041
        %1162 = vmatprep.subr.bf16.mxu0 %v1038
        %1163 = vmatpush1.bf16.msra.mxu0 %v1037
        %1164 = vmatprep.subr.bf16.mxu0 %v1034
        %1165 = vmatpush1.bf16.msra.mxu0 %v1033
        %1166 = vmatprep.subr.bf16.mxu0 0
        %1167 = vmatpush2.bf16.msra.mxu0 0
        %1168 = vmatprep.subr.bf16.mxu0 0
        %1169 = vmatpush2.bf16.msra.mxu0 0
        %1170 = vmatprep.subr.bf16.mxu0 0
        %1171 = vmatpush2.bf16.msra.mxu0 0
        %1172 = vmatprep.subr.bf16.mxu0 0
        %1173 = vmatpush2.bf16.msra.mxu0 0
        %1174 = vmatprep.subr.bf16.mxu0 0
        %1175 = vmatpush2.bf16.msra.mxu0 0
        %1176 = vmatprep.subr.bf16.mxu0 0
        %1177 = vmatpush2.bf16.msra.mxu0 0
        %1178 = vmatprep.subr.bf16.mxu0 0
        %1179 = vmatpush2.bf16.msra.mxu0 0
        %1180 = vmatprep.subr.bf16.mxu0 %v1066
        %1181 = vmatpush2.bf16.msra.mxu0 %v1065
        %1182 = vmatprep.mubr.bf16.mxu0 %v1105
        %1183 = vmatmul.mubr.bf16.gmra.mxu0 %v920
        %v1184 = vpop.f32.mrf.mxu0
        %v1185 = vadd.f32 %v907, %v1184
        %v1186 = vpop.f32.mrf.mxu0
        %v1187 = vadd.f32 %v907, %v1186
        %v1188 = vpop.f32.mrf.mxu0
        %v1189 = vadd.f32 %v912, %v1188
        %v1190 = vpop.f32.mrf.mxu0
        %v1191 = vadd.f32 %v912, %v1190
        %1192 = vdwg.mxu0
        %v1193 = vmax.f32 %v1142, 0.0
        %v1194 = vmax.f32 %v1144, 0.0
        %v1195 = vmax.f32 %v1185, 0.0
        %v1196 = vmax.f32 %v1187, 0.0
        %v1197 = vmax.f32 %v1146, 0.0
        %v1198 = vmax.f32 %v1148, 0.0
        %v1199 = vmax.f32 %v1189, 0.0
        %v1200 = vmax.f32 %v1191, 0.0
        %v1201 = vld [vmem:[%s0] sm:$0xf]
        %v1203 = vlaneseq
        %v1204 = vshrl.u32 %v1203, 7
        %v1205 = vsub.s32 0, %v1204
        %v1206 = vrot.slane %v1201, %v1205
        %v1207 = vlaneseq
        %v1208 = vshrl.u32 %v1207, 7
        %v1209 = vsub.s32 1, %v1208
        %v1210 = vrot.slane %v1201, %v1209
        %v1211 = vlaneseq
        %v1212 = vshrl.u32 %v1211, 7
        %v1213 = vsub.s32 2, %v1212
        %v1214 = vrot.slane %v1201, %v1213
        %v1215 = vlaneseq
        %v1216 = vshrl.u32 %v1215, 7
        %v1217 = vsub.s32 3, %v1216
        %v1218 = vrot.slane %v1201, %v1217
        %v1223 = vmul.f32 %v1193, %v1206
        %v1224 = vmul.f32 %v1194, %v1210
        %v1225 = vmul.f32 %v1195, %v1214
        %v1226 = vmul.f32 %v1196, %v1218
        %v1227 = vmul.f32 %v1197, %v1206
        %v1228 = vmul.f32 %v1198, %v1210
        %v1229 = vmul.f32 %v1199, %v1214
        %v1230 = vmul.f32 %v1200, %v1218
        %v1231 = vpack.c.bf16 %v1227, %v1223
        %v1232 = vpack.c.bf16 %v1228, %v1224
        %v1233 = vpack.c.bf16 %v1229, %v1225
        %v1234 = vpack.c.bf16 %v1230, %v1226
        %v1239 = vunpack.c.l.b16 %v1231
        %v1240 = vunpack.c.l.b16 %v1232
        %v1241 = vunpack.c.l.b16 %v1233
        %v1242 = vunpack.c.l.b16 %v1234
        %v1243 = vunpack.c.h.b16 %v1231
        %v1244 = vunpack.c.h.b16 %v1232
        %v1245 = vunpack.c.h.b16 %v1233
        %v1246 = vunpack.c.h.b16 %v1234
        %v1247 = vpack.c.b16 %v1240, %v1239
        %v1248 = vpack.c.b16 %v1242, %v1241
        %v1249 = vpack.c.b16 %v1244, %v1243
        %v1250 = vpack.c.b16 %v1246, %v1245
        %1255 = vst [vmem:[#allocation3] sm:$0xff] %v1247
        %1256 = vst [vmem:[#allocation3 + $0x8] sm:$0xff] %v1248
        %1257 = vst [vmem:[#allocation3 + $0x10] sm:$0xff] %v1249
        %1258 = vst [vmem:[#allocation3 + $0x18] sm:$0xff] %v1250
        %v1259 = vld [vmem:[#allocation3] sm:$0xff]
        %v1260 = vld [vmem:[#allocation3 + $0x8] sm:$0xf]
        %v1261 = vld [vmem:[#allocation3 + $0x10] sm:$0xff]
        %v1262 = vld [vmem:[#allocation3 + $0x18] sm:$0xf]
        %1263 = vst [vmem:[#allocation2] sm:$0xff] %v1259
        %1264 = vst [vmem:[#allocation2 + $0x8] sm:$0xf] %v1260
        %1265 = vst [vmem:[#allocation2 + $0x10] sm:$0xff] %v1261
        %1266 = vst [vmem:[#allocation2 + $0x18] sm:$0xf] %v1262
        %v1267 = vld [vmem:[#allocation3] sm:$0xff]
        %v1268 = vld [vmem:[#allocation3 + $0x8] sm:$0xff]
        %v1269 = vld [vmem:[#allocation3 + $0x10] sm:$0xff]
        %v1270 = vld [vmem:[#allocation3 + $0x18] sm:$0xff]
        %1275 = vrot.lane.b32.xlu0 %v1267, 127
        %v1276 = vpop.permute.xlu0 %1275
        %1277 = vrot.lane.b32.xlu0 %v1268, 127
        %v1278 = vpop.permute.xlu0 %1277
        %1279 = vrot.lane.b32.xlu0 %v1269, 127
        %v1280 = vpop.permute.xlu0 %1279
        %1281 = vrot.lane.b32.xlu0 %v1270, 127
        %v1282 = vpop.permute.xlu0 %1281
        %v1283 = vrot.slane %v1276, 4
        %v1284 = vrot.slane %v1278, 4
        %v1285 = vrot.slane %v1280, 4
        %v1286 = vrot.slane %v1282, 4
        %v1287 = vsel %vm349, %v1283, %v1284
        %v1288 = vsel %vm351, %v1276, %v1287
        %v1289 = vsel %vm351, %v1278, %v1284
        %v1290 = vsel %vm349, %v1285, %v1286
        %v1291 = vsel %vm351, %v1280, %v1290
        %v1292 = vsel %vm351, %v1282, %v1286
        %1297 = vst [vmem:[#allocation2 + $0x20] sm:$0xff] %v1288
        %1298 = vst [vmem:[#allocation2 + $0x28] sm:$0xf] %v1289
        %1299 = vst [vmem:[#allocation2 + $0x30] sm:$0xff] %v1291
        %1300 = vst [vmem:[#allocation2 + $0x38] sm:$0xf] %v1292
        %v1301 = vld [vmem:[#allocation3] sm:$0xff]
        %v1302 = vld [vmem:[#allocation3 + $0x8] sm:$0xff]
        %v1303 = vld [vmem:[#allocation3 + $0x10] sm:$0xff]
        %v1304 = vld [vmem:[#allocation3 + $0x18] sm:$0xff]
        %1309 = vrot.lane.b32.xlu0 %v1301, 126
        %v1310 = vpop.permute.xlu0 %1309
        %1311 = vrot.lane.b32.xlu0 %v1302, 126
        %v1312 = vpop.permute.xlu0 %1311
        %1313 = vrot.lane.b32.xlu0 %v1303, 126
        %v1314 = vpop.permute.xlu0 %1313
        %1315 = vrot.lane.b32.xlu0 %v1304, 126
        %v1316 = vpop.permute.xlu0 %1315
        %v1317 = vrot.slane %v1310, 4
        %v1318 = vrot.slane %v1312, 4
        %v1319 = vrot.slane %v1314, 4
        %v1320 = vrot.slane %v1316, 4
        %v1321 = vsel %vm349, %v1317, %v1318
        %v1322 = vsel %vm422, %v1310, %v1321
        %v1323 = vsel %vm422, %v1312, %v1318
        %v1324 = vsel %vm349, %v1319, %v1320
        %v1325 = vsel %vm422, %v1314, %v1324
        %v1326 = vsel %vm422, %v1316, %v1320
        %1331 = vst [vmem:[#allocation2 + $0x40] sm:$0xff] %v1322
        %1332 = vst [vmem:[#allocation2 + $0x48] sm:$0xf] %v1323
        %1333 = vst [vmem:[#allocation2 + $0x50] sm:$0xff] %v1325
        %1334 = vst [vmem:[#allocation2 + $0x58] sm:$0xf] %v1326
        %v1335 = vld [vmem:[#allocation3] sm:$0xff]
        %v1336 = vld [vmem:[#allocation3 + $0x8] sm:$0xff]
        %v1337 = vld [vmem:[#allocation3 + $0x10] sm:$0xff]
        %v1338 = vld [vmem:[#allocation3 + $0x18] sm:$0xff]
        %1343 = vrot.lane.b32.xlu0 %v1335, 110
        %v1344 = vpop.permute.xlu0 %1343
        %1345 = vrot.lane.b32.xlu0 %v1336, 110
        %v1346 = vpop.permute.xlu0 %1345
        %1347 = vrot.lane.b32.xlu0 %v1337, 110
        %v1348 = vpop.permute.xlu0 %1347
        %1349 = vrot.lane.b32.xlu0 %v1338, 110
        %v1350 = vpop.permute.xlu0 %1349
        %v1351 = vrot.slane %v1344, 4
        %v1352 = vrot.slane %v1346, 4
        %v1353 = vrot.slane %v1348, 4
        %v1354 = vrot.slane %v1350, 4
        %v1355 = vsel %vm349, %v1351, %v1352
        %v1356 = vsel %vm493, %v1344, %v1355
        %v1357 = vsel %vm493, %v1346, %v1352
        %v1358 = vsel %vm349, %v1353, %v1354
        %v1359 = vsel %vm493, %v1348, %v1358
        %v1360 = vsel %vm493, %v1350, %v1354
        %1365 = vst [vmem:[#allocation2 + $0x60] sm:$0xff] %v1356
        %1366 = vst [vmem:[#allocation2 + $0x68] sm:$0xf] %v1357
        %1367 = vst [vmem:[#allocation2 + $0x70] sm:$0xff] %v1359
        %1368 = vst [vmem:[#allocation2 + $0x78] sm:$0xf] %v1360
        %v1369 = vld [vmem:[#allocation3] sm:$0xff]
        %v1370 = vld [vmem:[#allocation3 + $0x8] sm:$0xff]
        %v1371 = vld [vmem:[#allocation3 + $0x10] sm:$0xff]
        %v1372 = vld [vmem:[#allocation3 + $0x18] sm:$0xff]
        %1377 = vrot.lane.b32.xlu0 %v1369, 109
        %v1378 = vpop.permute.xlu0 %1377
        %1379 = vrot.lane.b32.xlu0 %v1370, 109
        %v1380 = vpop.permute.xlu0 %1379
        %1381 = vrot.lane.b32.xlu0 %v1371, 109
        %v1382 = vpop.permute.xlu0 %1381
        %1383 = vrot.lane.b32.xlu0 %v1372, 109
        %v1384 = vpop.permute.xlu0 %1383
        %v1385 = vrot.slane %v1378, 4
        %v1386 = vrot.slane %v1380, 4
        %v1387 = vrot.slane %v1382, 4
        %v1388 = vrot.slane %v1384, 4
        %v1389 = vsel %vm349, %v1385, %v1386
        %v1390 = vsel %vm564, %v1378, %v1389
        %v1391 = vsel %vm564, %v1380, %v1386
        %v1392 = vsel %vm349, %v1387, %v1388
        %v1393 = vsel %vm564, %v1382, %v1392
        %v1394 = vsel %vm564, %v1384, %v1388
        %1399 = vst [vmem:[#allocation2 + $0x80] sm:$0xff] %v1390
        %1400 = vst [vmem:[#allocation2 + $0x88] sm:$0xf] %v1391
        %1401 = vst [vmem:[#allocation2 + $0x90] sm:$0xff] %v1393
        %1402 = vst [vmem:[#allocation2 + $0x98] sm:$0xf] %v1394
        %v1403 = vld [vmem:[#allocation3] sm:$0xff]
        %v1404 = vld [vmem:[#allocation3 + $0x8] sm:$0xff]
        %v1405 = vld [vmem:[#allocation3 + $0x10] sm:$0xff]
        %v1406 = vld [vmem:[#allocation3 + $0x18] sm:$0xff]
        %1411 = vrot.lane.b32.xlu0 %v1403, 108
        %v1412 = vpop.permute.xlu0 %1411
        %1413 = vrot.lane.b32.xlu0 %v1404, 108
        %v1414 = vpop.permute.xlu0 %1413
        %1415 = vrot.lane.b32.xlu0 %v1405, 108
        %v1416 = vpop.permute.xlu0 %1415
        %1417 = vrot.lane.b32.xlu0 %v1406, 108
        %v1418 = vpop.permute.xlu0 %1417
        %v1419 = vrot.slane %v1412, 4
        %v1420 = vrot.slane %v1414, 4
        %v1421 = vrot.slane %v1416, 4
        %v1422 = vrot.slane %v1418, 4
        %v1423 = vsel %vm349, %v1419, %v1420
        %v1424 = vsel %vm635, %v1412, %v1423
        %v1425 = vsel %vm635, %v1414, %v1420
        %v1426 = vsel %vm349, %v1421, %v1422
        %v1427 = vsel %vm635, %v1416, %v1426
        %v1428 = vsel %vm635, %v1418, %v1422
        %1433 = vst [vmem:[#allocation2 + $0xa0] sm:$0xff] %v1424
        %1434 = vst [vmem:[#allocation2 + $0xa8] sm:$0xf] %v1425
        %1435 = vst [vmem:[#allocation2 + $0xb0] sm:$0xff] %v1427
        %1436 = vst [vmem:[#allocation2 + $0xb8] sm:$0xf] %v1428
        %v1437 = vld [vmem:[#allocation3] sm:$0xff]
        %v1438 = vld [vmem:[#allocation3 + $0x8] sm:$0xff]
        %v1439 = vld [vmem:[#allocation3 + $0x10] sm:$0xff]
        %v1440 = vld [vmem:[#allocation3 + $0x18] sm:$0xff]
        %1445 = vrot.lane.b32.xlu0 %v1437, 92
        %v1446 = vpop.permute.xlu0 %1445
        %1447 = vrot.lane.b32.xlu0 %v1438, 92
        %v1448 = vpop.permute.xlu0 %1447
        %1449 = vrot.lane.b32.xlu0 %v1439, 92
        %v1450 = vpop.permute.xlu0 %1449
        %1451 = vrot.lane.b32.xlu0 %v1440, 92
        %v1452 = vpop.permute.xlu0 %1451
        %v1453 = vrot.slane %v1446, 4
        %v1454 = vrot.slane %v1448, 4
        %v1455 = vrot.slane %v1450, 4
        %v1456 = vrot.slane %v1452, 4
        %v1457 = vsel %vm349, %v1453, %v1454
        %v1458 = vsel %vm706, %v1446, %v1457
        %v1459 = vsel %vm706, %v1448, %v1454
        %v1460 = vsel %vm349, %v1455, %v1456
        %v1461 = vsel %vm706, %v1450, %v1460
        %v1462 = vsel %vm706, %v1452, %v1456
        %1467 = vst [vmem:[#allocation2 + $0xc0] sm:$0xff] %v1458
        %1468 = vst [vmem:[#allocation2 + $0xc8] sm:$0xf] %v1459
        %1469 = vst [vmem:[#allocation2 + $0xd0] sm:$0xff] %v1461
        %1470 = vst [vmem:[#allocation2 + $0xd8] sm:$0xf] %v1462
        %v1471 = vld [vmem:[#allocation3] sm:$0xff]
        %v1472 = vld [vmem:[#allocation3 + $0x8] sm:$0xff]
        %v1473 = vld [vmem:[#allocation3 + $0x10] sm:$0xff]
        %v1474 = vld [vmem:[#allocation3 + $0x18] sm:$0xff]
        %1479 = vrot.lane.b32.xlu0 %v1471, 91
        %v1480 = vpop.permute.xlu0 %1479
        %1481 = vrot.lane.b32.xlu0 %v1472, 91
        %v1482 = vpop.permute.xlu0 %1481
        %1483 = vrot.lane.b32.xlu0 %v1473, 91
        %v1484 = vpop.permute.xlu0 %1483
        %1485 = vrot.lane.b32.xlu0 %v1474, 91
        %v1486 = vpop.permute.xlu0 %1485
        %v1487 = vrot.slane %v1480, 4
        %v1488 = vrot.slane %v1482, 4
        %v1489 = vrot.slane %v1484, 4
        %v1490 = vrot.slane %v1486, 4
        %v1491 = vsel %vm349, %v1487, %v1488
        %v1492 = vsel %vm777, %v1480, %v1491
        %v1493 = vsel %vm777, %v1482, %v1488
        %v1494 = vsel %vm349, %v1489, %v1490
        %v1495 = vsel %vm777, %v1484, %v1494
        %v1496 = vsel %vm777, %v1486, %v1490
        %1501 = vst [vmem:[#allocation2 + $0xe0] sm:$0xff] %v1492
        %1502 = vst [vmem:[#allocation2 + $0xe8] sm:$0xf] %v1493
        %1503 = vst [vmem:[#allocation2 + $0xf0] sm:$0xff] %v1495
        %1504 = vst [vmem:[#allocation2 + $0xf8] sm:$0xf] %v1496
        %v1505 = vld [vmem:[#allocation3] sm:$0xff]
        %v1506 = vld [vmem:[#allocation3 + $0x8] sm:$0xff]
        %v1507 = vld [vmem:[#allocation3 + $0x10] sm:$0xff]
        %v1508 = vld [vmem:[#allocation3 + $0x18] sm:$0xff]
        %1513 = vrot.lane.b32.xlu0 %v1505, 90
        %v1514 = vpop.permute.xlu0 %1513
        %1515 = vrot.lane.b32.xlu0 %v1506, 90
        %v1516 = vpop.permute.xlu0 %1515
        %1517 = vrot.lane.b32.xlu0 %v1507, 90
        %v1518 = vpop.permute.xlu0 %1517
        %1519 = vrot.lane.b32.xlu0 %v1508, 90
        %v1520 = vpop.permute.xlu0 %1519
        %v1521 = vrot.slane %v1514, 4
        %v1522 = vrot.slane %v1516, 4
        %v1523 = vrot.slane %v1518, 4
        %v1524 = vrot.slane %v1520, 4
        %v1525 = vsel %vm349, %v1521, %v1522
        %v1526 = vsel %vm848, %v1514, %v1525
        %v1527 = vsel %vm848, %v1516, %v1522
        %v1528 = vsel %vm349, %v1523, %v1524
        %v1529 = vsel %vm848, %v1518, %v1528
        %v1530 = vsel %vm848, %v1520, %v1524
        %1535 = vst [vmem:[#allocation2 + $0x100] sm:$0xff] %v1526
        %1536 = vst [vmem:[#allocation2 + $0x108] sm:$0xf] %v1527
        %1537 = vst [vmem:[#allocation2 + $0x110] sm:$0xff] %v1529
        %1538 = vst [vmem:[#allocation2 + $0x118] sm:$0xf] %v1530
        %v1539 = vld [vmem:[#allocation7] sm:$0xff]
        %v1540 = vld [vmem:[#allocation7 + $0x8] sm:$0xff]
        %v1541 = vld [vmem:[#allocation2] sm:$0xff]
        %v1542 = vld [vmem:[#allocation2 + $0x8] sm:$0xf]
        %v1543 = vld [vmem:[#allocation2 + $0x10] sm:$0xff]
        %v1544 = vld [vmem:[#allocation2 + $0x18] sm:$0xf]
        %v1545 = vld [vmem:[#allocation2 + $0x20] sm:$0xff]
        %v1546 = vld [vmem:[#allocation2 + $0x28] sm:$0xf]
        %v1547 = vld [vmem:[#allocation2 + $0x30] sm:$0xff]
        %v1548 = vld [vmem:[#allocation2 + $0x38] sm:$0xf]
        %v1549 = vld [vmem:[#allocation2 + $0x40] sm:$0xff]
        %v1550 = vld [vmem:[#allocation2 + $0x48] sm:$0xf]
        %v1551 = vld [vmem:[#allocation2 + $0x50] sm:$0xff]
        %v1552 = vld [vmem:[#allocation2 + $0x58] sm:$0xf]
        %v1553 = vld [vmem:[#allocation2 + $0x60] sm:$0xff]
        %v1554 = vld [vmem:[#allocation2 + $0x68] sm:$0xf]
        %v1555 = vld [vmem:[#allocation2 + $0x70] sm:$0xff]
        %v1556 = vld [vmem:[#allocation2 + $0x78] sm:$0xf]
        %v1557 = vld [vmem:[#allocation2 + $0x80] sm:$0xff]
        %v1558 = vld [vmem:[#allocation2 + $0x88] sm:$0xf]
        %v1559 = vld [vmem:[#allocation2 + $0x90] sm:$0xff]
        %v1560 = vld [vmem:[#allocation2 + $0x98] sm:$0xf]
        %v1561 = vld [vmem:[#allocation2 + $0xa0] sm:$0xff]
        %v1562 = vld [vmem:[#allocation2 + $0xa8] sm:$0xf]
        %v1563 = vld [vmem:[#allocation2 + $0xb0] sm:$0xff]
        %v1564 = vld [vmem:[#allocation2 + $0xb8] sm:$0xf]
        %v1565 = vld [vmem:[#allocation2 + $0xc0] sm:$0xff]
        %v1566 = vld [vmem:[#allocation2 + $0xc8] sm:$0xf]
        %v1567 = vld [vmem:[#allocation2 + $0xd0] sm:$0xff]
        %v1568 = vld [vmem:[#allocation2 + $0xd8] sm:$0xf]
        %v1569 = vld [vmem:[#allocation2 + $0xe0] sm:$0xff]
        %v1570 = vld [vmem:[#allocation2 + $0xe8] sm:$0xf]
        %v1571 = vld [vmem:[#allocation2 + $0xf0] sm:$0xff]
        %v1572 = vld [vmem:[#allocation2 + $0xf8] sm:$0xf]
        %v1573 = vld [vmem:[#allocation2 + $0x100] sm:$0xff]
        %v1574 = vld [vmem:[#allocation2 + $0x108] sm:$0xf]
        %v1575 = vld [vmem:[#allocation2 + $0x110] sm:$0xff]
        %v1576 = vld [vmem:[#allocation2 + $0x118] sm:$0xf]
        %v1577 = vld [vmem:[%s227] sm:$0xff]
        %v1578 = vld [vmem:[%s227 + $0x8] sm:$0xff]
        %v1579 = vld [vmem:[%s227 + $0x10] sm:$0xff]
        %v1580 = vld [vmem:[%s227 + $0x18] sm:$0xff]
        %v1581 = vld [vmem:[%s227 + $0x28] sm:$0xff]
        %v1582 = vld [vmem:[%s227 + $0x30] sm:$0xff]
        %v1583 = vld [vmem:[%s227 + $0x38] sm:$0xff]
        %v1584 = vld [vmem:[%s227 + $0x40] sm:$0xff]
        %v1585 = vld [vmem:[%s4] sm:$0xff]
        %v1586 = vld [vmem:[%s4 + $0x8] sm:$0xff]
        %1588 = vset.pattern.permute.xlu0 1
        %1589 = vperm.xlu0 %1588, %v1585
        %v1590 = vpop.permute.xlu0 %1589
        %1593 = vset.pattern.permute.xlu0 1
        %1594 = vperm.xlu0 %1593, %v1586
        %v1595 = vpop.permute.xlu0 %1594
        %v1599 = vunpack.c.l.b16 %v1539
        %v1600 = vunpack.c.h.b16 %v1539
        %v1601 = vunpack.c.l.b16 %v1540
        %v1602 = vunpack.c.h.b16 %v1540
        %v1603 = vpack.c.b16 %v1601, %v1599
        %v1604 = vpack.c.b16 %v1602, %v1600
        %v1642 = vunpack.c.l.b16 %v1541
        %v1643 = vunpack.c.h.b16 %v1541
        %v1644 = vunpack.c.l.b16 %v1542
        %v1645 = vunpack.c.l.b16 %v1543
        %v1646 = vunpack.c.h.b16 %v1543
        %v1647 = vunpack.c.l.b16 %v1544
        %v1648 = vunpack.c.l.b16 %v1545
        %v1649 = vunpack.c.h.b16 %v1545
        %v1650 = vunpack.c.l.b16 %v1546
        %v1651 = vunpack.c.l.b16 %v1547
        %v1652 = vunpack.c.h.b16 %v1547
        %v1653 = vunpack.c.l.b16 %v1548
        %v1654 = vunpack.c.l.b16 %v1549
        %v1655 = vunpack.c.h.b16 %v1549
        %v1656 = vunpack.c.l.b16 %v1550
        %v1657 = vunpack.c.l.b16 %v1551
        %v1658 = vunpack.c.h.b16 %v1551
        %v1659 = vunpack.c.l.b16 %v1552
        %v1660 = vunpack.c.l.b16 %v1553
        %v1661 = vunpack.c.h.b16 %v1553
        %v1662 = vunpack.c.l.b16 %v1554
        %v1663 = vunpack.c.l.b16 %v1555
        %v1664 = vunpack.c.h.b16 %v1555
        %v1665 = vunpack.c.l.b16 %v1556
        %v1666 = vunpack.c.l.b16 %v1557
        %v1667 = vunpack.c.h.b16 %v1557
        %v1668 = vunpack.c.l.b16 %v1558
        %v1669 = vunpack.c.l.b16 %v1559
        %v1670 = vunpack.c.h.b16 %v1559
        %v1671 = vunpack.c.l.b16 %v1560
        %v1672 = vunpack.c.l.b16 %v1561
        %v1673 = vunpack.c.h.b16 %v1561
        %v1674 = vunpack.c.l.b16 %v1562
        %v1675 = vunpack.c.l.b16 %v1563
        %v1676 = vunpack.c.h.b16 %v1563
        %v1677 = vunpack.c.l.b16 %v1564
        %v1678 = vunpack.c.l.b16 %v1565
        %v1679 = vunpack.c.h.b16 %v1565
        %v1680 = vunpack.c.l.b16 %v1566
        %v1681 = vunpack.c.l.b16 %v1567
        %v1682 = vunpack.c.h.b16 %v1567
        %v1683 = vunpack.c.l.b16 %v1568
        %v1684 = vunpack.c.l.b16 %v1569
        %v1685 = vunpack.c.h.b16 %v1569
        %v1686 = vunpack.c.l.b16 %v1570
        %v1687 = vunpack.c.l.b16 %v1571
        %v1688 = vunpack.c.h.b16 %v1571
        %v1689 = vunpack.c.l.b16 %v1572
        %v1690 = vunpack.c.l.b16 %v1573
        %v1691 = vunpack.c.h.b16 %v1573
        %v1692 = vunpack.c.l.b16 %v1574
        %v1693 = vunpack.c.l.b16 %v1575
        %v1694 = vunpack.c.h.b16 %v1575
        %v1695 = vunpack.c.l.b16 %v1576
        %v1696 = vpack.c.b16 %v1645, %v1642
        %v1697 = vpack.c.b16 %v1646, %v1643
        %v1698 = vpack.c.b16 %v1647, %v1644
        %v1699 = vpack.c.b16 %v1651, %v1648
        %v1700 = vpack.c.b16 %v1652, %v1649
        %v1701 = vpack.c.b16 %v1653, %v1650
        %v1702 = vpack.c.b16 %v1657, %v1654
        %v1703 = vpack.c.b16 %v1658, %v1655
        %v1704 = vpack.c.b16 %v1659, %v1656
        %v1705 = vpack.c.b16 %v1663, %v1660
        %v1706 = vpack.c.b16 %v1664, %v1661
        %v1707 = vpack.c.b16 %v1665, %v1662
        %v1708 = vpack.c.b16 %v1669, %v1666
        %v1709 = vpack.c.b16 %v1670, %v1667
        %v1710 = vpack.c.b16 %v1671, %v1668
        %v1711 = vpack.c.b16 %v1675, %v1672
        %v1712 = vpack.c.b16 %v1676, %v1673
        %v1713 = vpack.c.b16 %v1677, %v1674
        %v1714 = vpack.c.b16 %v1681, %v1678
        %v1715 = vpack.c.b16 %v1682, %v1679
        %v1716 = vpack.c.b16 %v1683, %v1680
        %v1717 = vpack.c.b16 %v1687, %v1684
        %v1718 = vpack.c.b16 %v1688, %v1685
        %v1719 = vpack.c.b16 %v1689, %v1686
        %v1720 = vpack.c.b16 %v1693, %v1690
        %v1721 = vpack.c.b16 %v1694, %v1691
        %v1722 = vpack.c.b16 %v1695, %v1692
        %v1751 = vsel %vm1103, %v1604, 0
        %1753 = vmatprep.subr.bf16.mxu0 %v1718
        %1754 = vmatpush1.bf16.msra.mxu0 %v1717
        %1755 = vmatprep.subr.bf16.mxu0 %v1715
        %1756 = vmatpush1.bf16.msra.mxu0 %v1714
        %1757 = vmatprep.subr.bf16.mxu0 %v1712
        %1758 = vmatpush1.bf16.msra.mxu0 %v1711
        %1759 = vmatprep.subr.bf16.mxu0 %v1709
        %1760 = vmatpush1.bf16.msra.mxu0 %v1708
        %1761 = vmatprep.subr.bf16.mxu0 %v1706
        %1762 = vmatpush1.bf16.msra.mxu0 %v1705
        %1763 = vmatprep.subr.bf16.mxu0 %v1703
        %1764 = vmatpush1.bf16.msra.mxu0 %v1702
        %1765 = vmatprep.subr.bf16.mxu0 %v1700
        %1766 = vmatpush1.bf16.msra.mxu0 %v1699
        %1767 = vmatprep.subr.bf16.mxu0 %v1697
        %1768 = vmatpush1.bf16.msra.mxu0 %v1696
        %1769 = vmatprep.subr.bf16.mxu0 0
        %1770 = vmatpush2.bf16.msra.mxu0 0
        %1771 = vmatprep.subr.bf16.mxu0 0
        %1772 = vmatpush2.bf16.msra.mxu0 0
        %1773 = vmatprep.subr.bf16.mxu0 0
        %1774 = vmatpush2.bf16.msra.mxu0 0
        %1775 = vmatprep.subr.bf16.mxu0 0
        %1776 = vmatpush2.bf16.msra.mxu0 0
        %1777 = vmatprep.subr.bf16.mxu0 0
        %1778 = vmatpush2.bf16.msra.mxu0 0
        %1779 = vmatprep.subr.bf16.mxu0 0
        %1780 = vmatpush2.bf16.msra.mxu0 0
        %1781 = vmatprep.subr.bf16.mxu0 0
        %1782 = vmatpush2.bf16.msra.mxu0 0
        %1783 = vmatprep.subr.bf16.mxu0 %v1721
        %1784 = vmatpush2.bf16.msra.mxu0 %v1720
        %1785 = vmatprep.mubr.bf16.mxu0 %v1751
        %1786 = vmatmul.mubr.bf16.gmra.mxu0 %v1603
        %v1787 = vpop.f32.mrf.mxu0
        %v1788 = vadd.f32 %v1590, %v1787
        %v1789 = vpop.f32.mrf.mxu0
        %v1790 = vadd.f32 %v1590, %v1789
        %v1791 = vpop.f32.mrf.mxu0
        %v1792 = vadd.f32 %v1595, %v1791
        %v1793 = vpop.f32.mrf.mxu0
        %v1794 = vadd.f32 %v1595, %v1793
        %1795 = vdwg.mxu0
        %1796 = vmatprep.subr.bf16.mxu0 0
        %1797 = vmatpush1.bf16.msra.mxu0 %v1719
        %1798 = vmatprep.subr.bf16.mxu0 0
        %1799 = vmatpush1.bf16.msra.mxu0 %v1716
        %1800 = vmatprep.subr.bf16.mxu0 0
        %1801 = vmatpush1.bf16.msra.mxu0 %v1713
        %1802 = vmatprep.subr.bf16.mxu0 0
        %1803 = vmatpush1.bf16.msra.mxu0 %v1710
        %1804 = vmatprep.subr.bf16.mxu0 0
        %1805 = vmatpush1.bf16.msra.mxu0 %v1707
        %1806 = vmatprep.subr.bf16.mxu0 0
        %1807 = vmatpush1.bf16.msra.mxu0 %v1704
        %1808 = vmatprep.subr.bf16.mxu0 0
        %1809 = vmatpush1.bf16.msra.mxu0 %v1701
        %1810 = vmatprep.subr.bf16.mxu0 0
        %1811 = vmatpush1.bf16.msra.mxu0 %v1698
        %1812 = vmatprep.subr.bf16.mxu0 0
        %1813 = vmatpush2.bf16.msra.mxu0 0
        %1814 = vmatprep.subr.bf16.mxu0 0
        %1815 = vmatpush2.bf16.msra.mxu0 0
        %1816 = vmatprep.subr.bf16.mxu0 0
        %1817 = vmatpush2.bf16.msra.mxu0 0
        %1818 = vmatprep.subr.bf16.mxu0 0
        %1819 = vmatpush2.bf16.msra.mxu0 0
        %1820 = vmatprep.subr.bf16.mxu0 0
        %1821 = vmatpush2.bf16.msra.mxu0 0
        %1822 = vmatprep.subr.bf16.mxu0 0
        %1823 = vmatpush2.bf16.msra.mxu0 0
        %1824 = vmatprep.subr.bf16.mxu0 0
        %1825 = vmatpush2.bf16.msra.mxu0 0
        %1826 = vmatprep.subr.bf16.mxu0 0
        %1827 = vmatpush2.bf16.msra.mxu0 %v1722
        %1828 = vmatprep.mubr.bf16.mxu0 %v1751
        %1829 = vmatmul.mubr.bf16.gmra.mxu0 %v1603
        %v1830 = vpop.f32.mrf.mxu0
        %v1831 = vadd.f32 %v1590, %v1830
        %v1832 = vpop.f32.mrf.mxu0
        %v1833 = vpop.f32.mrf.mxu0
        %v1834 = vadd.f32 %v1595, %v1833
        %v1835 = vpop.f32.mrf.mxu0
        %1836 = vdwg.mxu0
        %1845 = vrot.lane.b32.xlu0 %v1577, 90
        %v1846 = vpop.permute.xlu0 %1845
        %1847 = vrot.lane.b32.xlu0 %v1578, 90
        %v1848 = vpop.permute.xlu0 %1847
        %1849 = vrot.lane.b32.xlu0 %v1579, 90
        %v1850 = vpop.permute.xlu0 %1849
        %1851 = vrot.lane.b32.xlu0 %v1580, 90
        %v1852 = vpop.permute.xlu0 %1851
        %1853 = vrot.lane.b32.xlu0 %v1581, 90
        %v1854 = vpop.permute.xlu0 %1853
        %1855 = vrot.lane.b32.xlu0 %v1582, 90
        %v1856 = vpop.permute.xlu0 %1855
        %1857 = vrot.lane.b32.xlu0 %v1583, 90
        %v1858 = vpop.permute.xlu0 %1857
        %1859 = vrot.lane.b32.xlu0 %v1584, 90
        %v1860 = vpop.permute.xlu0 %1859
        %vm1861 = vcmask 736256
        %v1862 = vsel %vm1861, %v1846, %v1848
        %v1863 = vsel %vm1861, %v1848, %v1850
        %v1864 = vsel %vm1861, %v1850, %v1852
        %v1865 = vsel %vm1861, %v1854, %v1856
        %v1866 = vsel %vm1861, %v1856, %v1858
        %v1867 = vsel %vm1861, %v1858, %v1860
        %v1874 = vadd.f32 %v1788, %v1862
        %v1875 = vadd.f32 %v1790, %v1863
        %v1876 = vadd.f32 %v1831, %v1864
        %v1877 = vadd.f32 %v1792, %v1865
        %v1878 = vadd.f32 %v1794, %v1866
        %v1879 = vadd.f32 %v1834, %v1867
        %v1880 = vmax.f32 %v1874, 0.0
        %v1881 = vmax.f32 %v1875, 0.0
        %v1882 = vmax.f32 %v1876, 0.0
        %v1883 = vmax.f32 %v1877, 0.0
        %v1884 = vmax.f32 %v1878, 0.0
        %v1885 = vmax.f32 %v1879, 0.0
        %1886 = vst [vmem:[%s257] sm:$0xff] %v1880
        %1887 = vst [vmem:[%s257 + $0x8] sm:$0xff] %v1881
        %1888 = vst [vmem:[%s257 + $0x10] sm:$0xff] %v1882
        %1889 = vst [vmem:[%s257 + $0x18] sm:$0xff] %v1883
        %1890 = vst [vmem:[%s257 + $0x20] sm:$0xff] %v1884
        %1891 = vst [vmem:[%s257 + $0x28] sm:$0xff] %v1885
        %s1892 = sand.u32 %s141, 1
        %s1893 = scalar_lea.sflag [#allocation6], %s1892
        %s1894 = sand.u32 %s141, 1
        %s1895 = smul.addr %s1894, 48
        %s1896 = scalar_lea.vmem [#allocation9], %s1895
        // Predicated region
        $region49: #{tpu_custom_call.1} parent=39 // pred_check
          %p1897 = pneg %p151
        $region50: #{tpu_custom_call.1} parent=39 // pred_check_branch
          %1899 = sbr.rel (%p1897) target = $region52
        $region51: #{tpu_custom_call.1} parent=39 // pred_region
          %s1901 = ssub.s32 768, 768
          %1902 = vsyncadd %s1893, %s1901
          %s1903 = smul.addr %s23, 6
          %s1904 = smul.addr %s1903, 128
          %s1905 = scalar_lea.hbm %s5, %s1904
          %s1906 = sshll.u32 %s1896, 4
          %s1907 = int_to_ptr.vmem [resolvable:$true] %s1906
          %1912 = dma.vmem_to_hbm [thread:$0]  %s1907, 768, %s1905, %s1893, 384, 384, 24
        $region52: #{tpu_custom_call.1} parent=39 // pred_fallthru
          _
      $region40: #{tpu_custom_call.1} parent=5 // pred_fallthru
        _
      %p1913 = scmp.le.s32.totalorder 2, %s18
      // Predicated region
      $region53: #{tpu_custom_call.1} parent=5 // pred_check
        %p1914 = pneg %p1913
      $region54: #{tpu_custom_call.1} parent=5 // pred_check_branch
        %1916 = sbr.rel (%p1914) target = $region56
      $region55: #{tpu_custom_call.1} parent=5 // pred_region
        %s1917 = ssub.s32 %s18, 2
        // Predicated region
        $region57: #{tpu_custom_call.1} parent=55 // pred_check
          %p1918 = pneg %p157
        $region58: #{tpu_custom_call.1} parent=55 // pred_check_branch
          %1920 = sbr.rel (%p1918) target = $region60
        $region59: #{tpu_custom_call.1} parent=55 // pred_region
          %s1921 = sand.u32 %s142, 1
          %s1922 = scalar_lea.sflag [#allocation6], %s1921
          %s1923 = sand.u32 %s142, 1
          %s1924 = smul.addr %s1923, 48
          %s1925 = scalar_lea.vmem [#allocation9], %s1924
          %1926 = dma.done %s1922, 768
        $region60: #{tpu_custom_call.1} parent=55 // pred_fallthru
          _
      $region56: #{tpu_custom_call.1} parent=5 // pred_fallthru
        _
    $region6: #{tpu_custom_call.1} parent=1 // loop_footer
      %s22 = sadd.s32 1, %s18
    $region7: #{tpu_custom_call.1} parent=1 // loop_footer_branch
      %17 = sbr.rel target = $region3
    $region8: #{tpu_custom_call.1} parent=1 // loop_exit
      _
    %1927 = vsyncpa [#allocation5], 1
    %s1928 = scalar_lea.sflag [#allocation5], 1
    %1929 = vsyncpa %s1928, 1
    %1930 = vsyncpa [#allocation8], 1
    %1931 = vsyncpa [#allocation6], 1
    %s1932 = scalar_lea.sflag [#allocation6], 1
    %1933 = vsyncpa %s1932, 1

</llo_original>
